<compile_context>
chip_gen: v7x
topology: tpu7x:2x2x1
jax: 0.10.0
libtpu: 0.0.40
codegen_flags: <defaults>
</compile_context>

<pallas_src>
import functools

import jax
import jax.numpy as jnp
from jax import lax
from jax.experimental import pallas as pl
from jax.experimental.pallas import tpu as pltpu


def _sdpa_kernel(xf_ref, wq_ref, wkv_ref, wo_ref, o_ref, kv_ref,
                 *, H, A, E, TQ):
    cdtype = kv_ref.dtype  # matmul-operand dtype (bf16 by default)

    # K|V for the whole sequence: computed once per batch (first q-tile) and
    # kept in VMEM scratch across the q-tile axis.
    @pl.when(pl.program_id(1) == 0)
    def _():
        kv_ref[...] = jnp.dot(
            xf_ref[...].astype(cdtype), wkv_ref[...],
            preferred_element_type=jnp.float32,
        ).astype(kv_ref.dtype)

    # q rows for this tile: sliced from the already-resident (L, E) block —
    # no separate DMA'd q input.
    q_start = pl.multiple_of(pl.program_id(1) * TQ, TQ)
    xq = xf_ref[pl.ds(q_start, TQ), :].astype(cdtype)

    # Head-fused Q projection: one lane-dense (TQ, E) @ (E, E) matmul.
    # 1/sqrt(A) is already folded into wq.
    q_all = jnp.dot(
        xq, wq_ref[...], preferred_element_type=jnp.float32
    ).astype(cdtype)

    # Per-head attention; head outputs are concatenated in registers (no
    # misaligned VMEM scratch stores) and fed into a single output projection.
    heads = []
    for h in range(H):
        qh = q_all[:, h * A:(h + 1) * A]                    # (TQ, A)
        kh = kv_ref[:, h * A:(h + 1) * A]                   # (L,  A)
        vh = kv_ref[:, E + h * A:E + (h + 1) * A]           # (L,  A)

        # contraction on the last dim of both operands -> no materialized .T
        s = lax.dot_general(
            qh, kh, (((1,), (1,)), ((), ())),
            preferred_element_type=jnp.float32)             # (TQ, L) f32

        m = jnp.max(s, axis=-1, keepdims=True)
        e = jnp.exp(s - m)                                  # unnormalized, f32
        denom = jnp.sum(e, axis=-1, keepdims=True)          # (TQ, 1) f32

        head = jnp.dot(e.astype(cdtype), vh,
                       preferred_element_type=jnp.float32)  # (TQ, A) f32
        # deferred normalization: one reciprocal per row on the EUP
        head = head * pl.reciprocal(denom, approx=True)
        heads.append(head.astype(cdtype))

    ctx = jnp.concatenate(heads, axis=-1)                   # (TQ, E)

    # Single output projection with contraction K = E (full MXU feed).
    o_ref[...] = jnp.dot(
        ctx, wo_ref[...], preferred_element_type=jnp.float32
    ).astype(o_ref.dtype)


def _vmem_budget_bytes():
    """Generation-aware VMEM budget with headroom for compiler scratch."""
    cap = 64 * 1024 * 1024  # conservative fallback (v7x per-TC physical VMEM)
    try:
        info = pltpu.get_tpu_info()
        cap = int(getattr(info, "vmem_capacity_bytes", cap))
    except Exception:
        pass
    # Leave ~12 MiB for compiler internal scratch / stack; never request more
    # than ~110 MiB even on 128-MiB parts.
    return max(min(cap - 12 * 1024 * 1024, 110 * 1024 * 1024),
               32 * 1024 * 1024)


def _select_q_tile(L, E, in_itemsize, c_itemsize, budget):
    """Largest q tile whose estimated VMEM footprint fits the budget."""
    base = (4 * E * E * c_itemsize        # Wq + Wkv + Wo (single-buffered)
            + 2 * L * E * in_itemsize     # activations block (double-buffered)
            + 2 * L * E * c_itemsize)     # (L, 2E) K|V scratch
    if base >= budget:
        raise ValueError(
            f"SDPA Pallas kernel: weights + per-batch K|V scratch "
            f"(~{base >> 20} MiB) exceed the VMEM budget ({budget >> 20} MiB) "
            f"for L={L}, E={E}. "
            "TODO(synk): kv-tiled flash-style path needed for this shape.")

    def fits(tq):
        per_tile = (2 * tq * E * in_itemsize   # output block (double-buffered)
                    + 3 * tq * L * 4           # f32 score/exp intermediates
                    + 3 * tq * E * 4)          # q_all / ctx temporaries
        return base + per_tile <= budget

    candidates = [t for t in (1024, 512, 256, 128, 64, 32, 16, 8) if L % t == 0]
    for t in candidates:
        if fits(t):
            return t
    if candidates:
        return candidates[-1]   # best effort; may spill but still correct
    return L                    # full-extent block (always legal)


def sdpa_operator(embeddings, qkv_weight, out_weight, H,
                  *, q_tile=None, matmul_dtype=None):
    """embeddings: (B, L, E); qkv_weight: (3E, E); out_weight: (E, E) (PyTorch layouts)."""
    B, L, E = embeddings.shape
    assert E % H == 0
    A = E // H
    scale = float(A) ** -0.5
    in_dtype = embeddings.dtype

    # Matmul-operand dtype: bf16 by default (MXU-native on v5e/v6e/v7x);
    # softmax statistics always stay in f32 inside the kernel.
    if matmul_dtype is None:
        matmul_dtype = jnp.bfloat16 if in_dtype == jnp.float32 else in_dtype
    cdtype = jnp.dtype(matmul_dtype)

    # Split the PyTorch weights exactly as the module's reshape/permute/chunk
    # does: qkv = x @ qkv_weight.T; the column block for head h is
    # [h*3A:(h+1)*3A] with [q | k | v] sub-blocks of width A.
    wqkv_t = qkv_weight.T.reshape(E, H, 3, A)                       # (E, H, 3, A)
    wq = (wqkv_t[:, :, 0, :].reshape(E, E) * scale).astype(cdtype)  # scale folded in
    wk = wqkv_t[:, :, 1, :].reshape(E, E)
    wv = wqkv_t[:, :, 2, :].reshape(E, E)
    wkv = jnp.concatenate([wk, wv], axis=1).astype(cdtype)          # (E, 2E)
    wo = out_weight.T.astype(cdtype)                                # (E, E), head-major rows

    in_itemsize = jnp.dtype(in_dtype).itemsize
    c_itemsize = cdtype.itemsize
    budget = _vmem_budget_bytes()

    if q_tile is None:
        q_tile = _select_q_tile(L, E, in_itemsize, c_itemsize, budget)
    assert q_tile == L or (L % q_tile == 0 and q_tile % 8 == 0)
    n_q = L // q_tile

    kernel = functools.partial(_sdpa_kernel, H=H, A=A, E=E, TQ=q_tile)

    return pl.pallas_call(
        kernel,
        out_shape=jax.ShapeDtypeStruct((B, L, E), in_dtype),
        grid_spec=pltpu.PrefetchScalarGridSpec(
            num_scalar_prefetch=0,
            grid=(B, n_q),
            in_specs=[
                # Per-batch activations (q rows sliced from this block in-kernel).
                pl.BlockSpec((None, L, E), lambda b, q: (b, 0, 0)),
                # Weights: constant index_map -> fetched once; single-buffered.
                pl.BlockSpec((E, E), lambda b, q: (0, 0),
                             pipeline_mode=pl.Buffered(1)),
                pl.BlockSpec((E, 2 * E), lambda b, q: (0, 0),
                             pipeline_mode=pl.Buffered(1)),
                pl.BlockSpec((E, E), lambda b, q: (0, 0),
                             pipeline_mode=pl.Buffered(1)),
            ],
            out_specs=pl.BlockSpec((None, q_tile, E), lambda b, q: (b, q, 0)),
            scratch_shapes=[
                pltpu.VMEM((L, 2 * E), cdtype),   # K|V for the current batch
            ],
        ),
        compiler_params=pltpu.CompilerParams(
            # B parallel (megacore); q-tile axis must stay arbitrary because
            # the K|V scratch is filled at q-tile 0 and reused afterwards.
            dimension_semantics=("parallel", "arbitrary"),
            vmem_limit_bytes=budget,
        ),
    )(embeddings, wq, wkv, wo)


def sdpa_reference(embeddings, qkv_weight, out_weight, H):
    """Pure-JAX reference mirroring the PyTorch forward (f32)."""
    B, L, E = embeddings.shape
    A = E // H
    scale = float(A) ** -0.5
    qkv = embeddings @ qkv_weight.T                           # (B, L, 3E)
    qkv = qkv.reshape(B, L, H, 3 * A).transpose(0, 2, 1, 3)   # (B, H, L, 3A)
    q, k, v = jnp.split(qkv, 3, axis=-1)
    attn = jnp.einsum("bhqa,bhka->bhqk", q, k) * scale
    attn = jax.nn.softmax(attn, axis=-1)
    values = jnp.einsum("bhqk,bhka->bhqa", attn, v)
    values = values.transpose(0, 2, 1, 3).reshape(B, L, E)
    return values @ out_weight.T


if __name__ == "__main__":
    B, L, E, H = 2, 8, 32, 4

    key = jax.random.PRNGKey(0)
    k_x, k_qkv, k_out = jax.random.split(key, 3)

    embeddings = jax.random.normal(k_x, (B, L, E), dtype=jnp.float32)
    # nn.Linear-style weights (PyTorch layout: (out, in)), deterministic init.
    qkv_weight = jax.random.normal(k_qkv, (3 * E, E), dtype=jnp.float32) * (E ** -0.5)
    out_weight = jax.random.normal(k_out, (E, E), dtype=jnp.float32) * (E ** -0.5)

    ref = sdpa_reference(embeddings, qkv_weight, out_weight, H)

    # 1) f32-operand path: tight numerics check (only the approx reciprocal
    #    in the softmax normalization deviates from exact f32).
    out_f32 = jax.block_until_ready(
        sdpa_operator(embeddings, qkv_weight, out_weight, H,
                      matmul_dtype=jnp.float32))
    assert out_f32.shape == (B, L, E)
    assert jnp.allclose(out_f32, ref, atol=1e-2, rtol=1e-2), \
        "f32-path mismatch vs reference"

    # 2) default path: bf16 matmul operands (MXU-native), f32 softmax stats.
    out_bf = jax.block_until_ready(
        sdpa_operator(embeddings, qkv_weight, out_weight, H))
    assert out_bf.shape == (B, L, E)
    assert jnp.allclose(out_bf, ref, atol=5e-2, rtol=5e-2), \
        "bf16-path mismatch vs reference"

    print("KERNEL_OK")
</pallas_src>

<mosaic_0001>
module attributes {stable_mosaic.version = 11 : i64} {
  func.func @_sdpa_kernel(%arg0: i32, %arg1: i32, %arg2: memref<1x8x32xf32, #tpu.memory_space<vmem>>, %arg3: memref<32x32xf32, #tpu.memory_space<vmem>>, %arg4: memref<32x64xf32, #tpu.memory_space<vmem>>, %arg5: memref<32x32xf32, #tpu.memory_space<vmem>>, %arg6: memref<1x8x32xf32, #tpu.memory_space<vmem>>, %arg7: memref<8x64xf32, #tpu.memory_space<vmem>>) attributes {dimension_semantics = [#tpu.dimension_semantics<parallel>, #tpu.dimension_semantics<arbitrary>], iteration_bounds = array<i64: 2, 1>, scalar_prefetch = 0 : i64, scratch_operands = 1 : i64, tpu.core_type = #tpu.core_type<tc>, window_params = [{transform_indices = @transform_0, window_bounds = array<i64: 1, 8, 32>}, {pipeline_mode = #tpu.pipeline_mode<synchronous>, transform_indices = @transform_1, window_bounds = array<i64: 32, 32>}, {pipeline_mode = #tpu.pipeline_mode<synchronous>, transform_indices = @transform_2, window_bounds = array<i64: 32, 64>}, {pipeline_mode = #tpu.pipeline_mode<synchronous>, transform_indices = @transform_3, window_bounds = array<i64: 32, 32>}, {transform_indices = @transform_4, window_bounds = array<i64: 1, 8, 32>}]} {
    %c0_i32 = arith.constant 0 : i32
    %0 = arith.cmpi eq, %arg1, %c0_i32 : i32
    %1 = arith.extui %0 : i1 to i32
    %c0_i32_0 = arith.constant 0 : i32
    %2 = arith.cmpi ne, %1, %c0_i32_0 : i32
    scf.if %2 {
      %c0_35 = arith.constant 0 : index
      %c0_36 = arith.constant 0 : index
      %c0_37 = arith.constant 0 : index
      %76 = vector.load %arg2[%c0_35, %c0_36, %c0_37] : memref<1x8x32xf32, #tpu.memory_space<vmem>>, vector<1x8x32xf32>
      %77 = vector.shape_cast %76 : vector<1x8x32xf32> to vector<8x32xf32>
      %c0_38 = arith.constant 0 : index
      %c0_39 = arith.constant 0 : index
      %78 = vector.load %arg4[%c0_38, %c0_39] : memref<32x64xf32, #tpu.memory_space<vmem>>, vector<32x64xf32>
      %cst_40 = arith.constant dense<0.000000e+00> : vector<8x64xf32>
      %79 = tpu.matmul %77, %78, %cst_40 {dimension_numbers = #tpu.dot_dimension_numbers<[1], [0], [0], [1], [0, 0, 1, 1], [], []>} : vector<8x32xf32>, vector<32x64xf32>, vector<8x64xf32> -> vector<8x64xf32>
      %c0_41 = arith.constant 0 : index
      %c0_42 = arith.constant 0 : index
      %80 = vector.load %arg7[%c0_41, %c0_42] : memref<8x64xf32, #tpu.memory_space<vmem>>, vector<8x64xf32>
      tpu.vector_store %arg7[%c0_41, %c0_42], %79 {strides = array<i32>} : memref<8x64xf32, #tpu.memory_space<vmem>>, vector<8x64xf32>,
    } else {
    }
    %c8_i32 = arith.constant 8 : i32
    %3 = arith.muli %arg1, %c8_i32 : i32
    %4 = tpu.assume_multiple %3, 8 : i32
    %c0 = arith.constant 0 : index
    %5 = arith.index_cast %4 : i32 to index
    %c0_1 = arith.constant 0 : index
    %6 = vector.load %arg2[%c0, %5, %c0_1] : memref<1x8x32xf32, #tpu.memory_space<vmem>>, vector<1x8x32xf32>
    %7 = vector.shape_cast %6 : vector<1x8x32xf32> to vector<8x32xf32>
    %c0_2 = arith.constant 0 : index
    %c0_3 = arith.constant 0 : index
    %8 = vector.load %arg3[%c0_2, %c0_3] : memref<32x32xf32, #tpu.memory_space<vmem>>, vector<32x32xf32>
    %cst = arith.constant dense<0.000000e+00> : vector<8x32xf32>
    %9 = tpu.matmul %7, %8, %cst {dimension_numbers = #tpu.dot_dimension_numbers<[1], [0], [0], [1], [0, 0, 1, 1], [], []>} : vector<8x32xf32>, vector<32x32xf32>, vector<8x32xf32> -> vector<8x32xf32>
    %10 = vector.extract_strided_slice %9 {offsets = [0, 0], sizes = [8, 8], strides = [1, 1]} : vector<8x32xf32> to vector<8x8xf32>
    %c0_4 = arith.constant 0 : index
    %c0_5 = arith.constant 0 : index
    %11 = vector.load %arg7[%c0_4, %c0_5] : memref<8x64xf32, #tpu.memory_space<vmem>>, vector<8x8xf32>
    %c0_6 = arith.constant 0 : index
    %c32 = arith.constant 32 : index
    %12 = vector.load %arg7[%c0_6, %c32] : memref<8x64xf32, #tpu.memory_space<vmem>>, vector<8x8xf32>
    %cst_7 = arith.constant dense<0.000000e+00> : vector<8x8xf32>
    %13 = tpu.matmul %10, %11, %cst_7 {dimension_numbers = #tpu.dot_dimension_numbers<[1], [1], [0], [0], [0, 0, 1, 0], [], []>} : vector<8x8xf32>, vector<8x8xf32>, vector<8x8xf32> -> vector<8x8xf32>
    %cst_8 = arith.constant dense<0xFF800000> : vector<8xf32>
    %14 = vector.multi_reduction <maximumf>, %13, %cst_8 [1] : vector<8x8xf32> to vector<8xf32>
    %15 = vector.shape_cast %14 : vector<8xf32> to vector<8x1xf32>
    %16 = vector.broadcast %15 : vector<8x1xf32> to vector<8x8xf32>
    %17 = arith.subf %13, %16 : vector<8x8xf32>
    %18 = math.exp %17 : vector<8x8xf32>
    %cst_9 = arith.constant dense<0.000000e+00> : vector<8xf32>
    %19 = vector.multi_reduction <add>, %18, %cst_9 [1] : vector<8x8xf32> to vector<8xf32>
    %20 = vector.shape_cast %19 : vector<8xf32> to vector<8x1xf32>
    %cst_10 = arith.constant dense<0.000000e+00> : vector<8x8xf32>
    %21 = tpu.matmul %18, %12, %cst_10 {dimension_numbers = #tpu.dot_dimension_numbers<[1], [0], [0], [1], [0, 0, 1, 1], [], []>} : vector<8x8xf32>, vector<8x8xf32>, vector<8x8xf32> -> vector<8x8xf32>
    %22 = tpu.reciprocal %20 {approx = true} : vector<8x1xf32> -> vector<8x1xf32>
    %23 = vector.broadcast %22 : vector<8x1xf32> to vector<8x8xf32>
    %24 = arith.mulf %21, %23 : vector<8x8xf32>
    %25 = vector.extract_strided_slice %9 {offsets = [0, 8], sizes = [8, 8], strides = [1, 1]} : vector<8x32xf32> to vector<8x8xf32>
    %c0_11 = arith.constant 0 : index
    %c8 = arith.constant 8 : index
    %26 = vector.load %arg7[%c0_11, %c8] : memref<8x64xf32, #tpu.memory_space<vmem>>, vector<8x8xf32>
    %c0_12 = arith.constant 0 : index
    %c40 = arith.constant 40 : index
    %27 = vector.load %arg7[%c0_12, %c40] : memref<8x64xf32, #tpu.memory_space<vmem>>, vector<8x8xf32>
    %cst_13 = arith.constant dense<0.000000e+00> : vector<8x8xf32>
    %28 = tpu.matmul %25, %26, %cst_13 {dimension_numbers = #tpu.dot_dimension_numbers<[1], [1], [0], [0], [0, 0, 1, 0], [], []>} : vector<8x8xf32>, vector<8x8xf32>, vector<8x8xf32> -> vector<8x8xf32>
    %cst_14 = arith.constant dense<0xFF800000> : vector<8xf32>
    %29 = vector.multi_reduction <maximumf>, %28, %cst_14 [1] : vector<8x8xf32> to vector<8xf32>
    %30 = vector.shape_cast %29 : vector<8xf32> to vector<8x1xf32>
    %31 = vector.broadcast %30 : vector<8x1xf32> to vector<8x8xf32>
    %32 = arith.subf %28, %31 : vector<8x8xf32>
    %33 = math.exp %32 : vector<8x8xf32>
    %cst_15 = arith.constant dense<0.000000e+00> : vector<8xf32>
    %34 = vector.multi_reduction <add>, %33, %cst_15 [1] : vector<8x8xf32> to vector<8xf32>
    %35 = vector.shape_cast %34 : vector<8xf32> to vector<8x1xf32>
    %cst_16 = arith.constant dense<0.000000e+00> : vector<8x8xf32>
    %36 = tpu.matmul %33, %27, %cst_16 {dimension_numbers = #tpu.dot_dimension_numbers<[1], [0], [0], [1], [0, 0, 1, 1], [], []>} : vector<8x8xf32>, vector<8x8xf32>, vector<8x8xf32> -> vector<8x8xf32>
    %37 = tpu.reciprocal %35 {approx = true} : vector<8x1xf32> -> vector<8x1xf32>
    %38 = vector.broadcast %37 : vector<8x1xf32> to vector<8x8xf32>
    %39 = arith.mulf %36, %38 : vector<8x8xf32>
    %40 = vector.extract_strided_slice %9 {offsets = [0, 16], sizes = [8, 8], strides = [1, 1]} : vector<8x32xf32> to vector<8x8xf32>
    %c0_17 = arith.constant 0 : index
    %c16 = arith.constant 16 : index
    %41 = vector.load %arg7[%c0_17, %c16] : memref<8x64xf32, #tpu.memory_space<vmem>>, vector<8x8xf32>
    %c0_18 = arith.constant 0 : index
    %c48 = arith.constant 48 : index
    %42 = vector.load %arg7[%c0_18, %c48] : memref<8x64xf32, #tpu.memory_space<vmem>>, vector<8x8xf32>
    %cst_19 = arith.constant dense<0.000000e+00> : vector<8x8xf32>
    %43 = tpu.matmul %40, %41, %cst_19 {dimension_numbers = #tpu.dot_dimension_numbers<[1], [1], [0], [0], [0, 0, 1, 0], [], []>} : vector<8x8xf32>, vector<8x8xf32>, vector<8x8xf32> -> vector<8x8xf32>
    %cst_20 = arith.constant dense<0xFF800000> : vector<8xf32>
    %44 = vector.multi_reduction <maximumf>, %43, %cst_20 [1] : vector<8x8xf32> to vector<8xf32>
    %45 = vector.shape_cast %44 : vector<8xf32> to vector<8x1xf32>
    %46 = vector.broadcast %45 : vector<8x1xf32> to vector<8x8xf32>
    %47 = arith.subf %43, %46 : vector<8x8xf32>
    %48 = math.exp %47 : vector<8x8xf32>
    %cst_21 = arith.constant dense<0.000000e+00> : vector<8xf32>
    %49 = vector.multi_reduction <add>, %48, %cst_21 [1] : vector<8x8xf32> to vector<8xf32>
    %50 = vector.shape_cast %49 : vector<8xf32> to vector<8x1xf32>
    %cst_22 = arith.constant dense<0.000000e+00> : vector<8x8xf32>
    %51 = tpu.matmul %48, %42, %cst_22 {dimension_numbers = #tpu.dot_dimension_numbers<[1], [0], [0], [1], [0, 0, 1, 1], [], []>} : vector<8x8xf32>, vector<8x8xf32>, vector<8x8xf32> -> vector<8x8xf32>
    %52 = tpu.reciprocal %50 {approx = true} : vector<8x1xf32> -> vector<8x1xf32>
    %53 = vector.broadcast %52 : vector<8x1xf32> to vector<8x8xf32>
    %54 = arith.mulf %51, %53 : vector<8x8xf32>
    %55 = vector.extract_strided_slice %9 {offsets = [0, 24], sizes = [8, 8], strides = [1, 1]} : vector<8x32xf32> to vector<8x8xf32>
    %c0_23 = arith.constant 0 : index
    %c24 = arith.constant 24 : index
    %56 = vector.load %arg7[%c0_23, %c24] : memref<8x64xf32, #tpu.memory_space<vmem>>, vector<8x8xf32>
    %c0_24 = arith.constant 0 : index
    %c56 = arith.constant 56 : index
    %57 = vector.load %arg7[%c0_24, %c56] : memref<8x64xf32, #tpu.memory_space<vmem>>, vector<8x8xf32>
    %cst_25 = arith.constant dense<0.000000e+00> : vector<8x8xf32>
    %58 = tpu.matmul %55, %56, %cst_25 {dimension_numbers = #tpu.dot_dimension_numbers<[1], [1], [0], [0], [0, 0, 1, 0], [], []>} : vector<8x8xf32>, vector<8x8xf32>, vector<8x8xf32> -> vector<8x8xf32>
    %cst_26 = arith.constant dense<0xFF800000> : vector<8xf32>
    %59 = vector.multi_reduction <maximumf>, %58, %cst_26 [1] : vector<8x8xf32> to vector<8xf32>
    %60 = vector.shape_cast %59 : vector<8xf32> to vector<8x1xf32>
    %61 = vector.broadcast %60 : vector<8x1xf32> to vector<8x8xf32>
    %62 = arith.subf %58, %61 : vector<8x8xf32>
    %63 = math.exp %62 : vector<8x8xf32>
    %cst_27 = arith.constant dense<0.000000e+00> : vector<8xf32>
    %64 = vector.multi_reduction <add>, %63, %cst_27 [1] : vector<8x8xf32> to vector<8xf32>
    %65 = vector.shape_cast %64 : vector<8xf32> to vector<8x1xf32>
    %cst_28 = arith.constant dense<0.000000e+00> : vector<8x8xf32>
    %66 = tpu.matmul %63, %57, %cst_28 {dimension_numbers = #tpu.dot_dimension_numbers<[1], [0], [0], [1], [0, 0, 1, 1], [], []>} : vector<8x8xf32>, vector<8x8xf32>, vector<8x8xf32> -> vector<8x8xf32>
    %67 = tpu.reciprocal %65 {approx = true} : vector<8x1xf32> -> vector<8x1xf32>
    %68 = vector.broadcast %67 : vector<8x1xf32> to vector<8x8xf32>
    %69 = arith.mulf %66, %68 : vector<8x8xf32>
    %70 = tpu.concatenate %24, %39, %54, %69 in 1 : vector<8x8xf32>, vector<8x8xf32>, vector<8x8xf32>, vector<8x8xf32> -> vector<8x32xf32>
    %c0_29 = arith.constant 0 : index
    %c0_30 = arith.constant 0 : index
    %71 = vector.load %arg5[%c0_29, %c0_30] : memref<32x32xf32, #tpu.memory_space<vmem>>, vector<32x32xf32>
    %cst_31 = arith.constant dense<0.000000e+00> : vector<8x32xf32>
    %72 = tpu.matmul %70, %71, %cst_31 {dimension_numbers = #tpu.dot_dimension_numbers<[1], [0], [0], [1], [0, 0, 1, 1], [], []>} : vector<8x32xf32>, vector<32x32xf32>, vector<8x32xf32> -> vector<8x32xf32>
    %c0_32 = arith.constant 0 : index
    %c0_33 = arith.constant 0 : index
    %c0_34 = arith.constant 0 : index
    %73 = vector.load %arg6[%c0_32, %c0_33, %c0_34] : memref<1x8x32xf32, #tpu.memory_space<vmem>>, vector<1x8x32xf32>
    %74 = vector.shape_cast %73 : vector<1x8x32xf32> to vector<8x32xf32>
    %75 = vector.shape_cast %72 : vector<8x32xf32> to vector<1x8x32xf32>
    tpu.vector_store %arg6[%c0_32, %c0_33, %c0_34], %75 {strides = array<i32>} : memref<1x8x32xf32, #tpu.memory_space<vmem>>, vector<1x8x32xf32>,
    return
  }
  func.func @transform_0(%arg0: i32, %arg1: i32) -> (i32, i32, i32) {
    %c0_i32 = arith.constant 0 : i32
    %c0_i32_0 = arith.constant 0 : i32
    %c0_i32_1 = arith.constant 0 : i32
    return %arg0, %c0_i32, %c0_i32_0 : i32, i32, i32
  }
  func.func @transform_1(%arg0: i32, %arg1: i32) -> (i32, i32) {
    %c0_i32 = arith.constant 0 : i32
    %c0_i32_0 = arith.constant 0 : i32
    %c0_i32_1 = arith.constant 0 : i32
    return %c0_i32, %c0_i32_0 : i32, i32
  }
  func.func @transform_2(%arg0: i32, %arg1: i32) -> (i32, i32) {
    %c0_i32 = arith.constant 0 : i32
    %c0_i32_0 = arith.constant 0 : i32
    %c0_i32_1 = arith.constant 0 : i32
    return %c0_i32, %c0_i32_0 : i32, i32
  }
  func.func @transform_3(%arg0: i32, %arg1: i32) -> (i32, i32) {
    %c0_i32 = arith.constant 0 : i32
    %c0_i32_0 = arith.constant 0 : i32
    %c0_i32_1 = arith.constant 0 : i32
    return %c0_i32, %c0_i32_0 : i32, i32
  }
  func.func @transform_4(%arg0: i32, %arg1: i32) -> (i32, i32, i32) {
    %c0_i32 = arith.constant 0 : i32
    %c0_i32_0 = arith.constant 0 : i32
    return %arg0, %arg1, %c0_i32 : i32, i32, i32
  }
}

</mosaic_0001>

<llo_original>
// kernel: tpu_custom_call.1
$region0: #{tpu_custom_call.1}
  #allocation0 [shape = 'u32[]', space=smem, size = 0x4, offset = 0x4, fixed_abs, tag = 'smem constant byte address 0x4 - core index']
  #allocation1 [shape = 'u32[144,128]{1,0:T(1,128)}', space=vmem, size = 0x12000, scoped, tag = 'internal scratch']
  #allocation2 [shape = 'f32[8,64]{1,0:T(8,128)}', space=vmem, size = 0x1000, scoped, tag = 'scratch operand']
  %s0 = inlined_call_operand.hbm [shape: f32[2,8,32], index: 0, kind: input, shape index: {}]
  %s1 = inlined_call_operand.hbm [shape: f32[32,32], index: 1, kind: input, shape index: {}]
  %s2 = inlined_call_operand.hbm [shape: f32[32,64], index: 2, kind: input, shape index: {}]
  %s3 = inlined_call_operand.hbm [shape: f32[32,32], index: 3, kind: input, shape index: {}]
  %s4 = inlined_call_operand.hbm [shape: f32[2,8,32], index: 4, kind: output, shape index: {}]
  %s5 = sld [smem:[#allocation0]]
  $region69: #{tpu_custom_call.1} parent=0
    _
  %s7 = ssub.s32 1, %s5
  %s8 = scalar_select 0, %s7, %s5
  $region1: #{tpu_custom_call.1} parent=0
    #allocation3 [shape = 'u8[8192]{0}', space=vmem, size = 0x2000, scoped, tag = 'input window, operand 0']
    #allocation4 [shape = 's32[2]{0}', space=sflag, size = 0x8, scoped, tag = 'scoped memory for tpu_custom_call.1']
    #allocation5 [shape = 's32[2]{0}', space=sflag, size = 0x8, scoped, tag = 'scoped memory for tpu_custom_call.1']
    #allocation6 [shape = 'u8[16384]{0}', space=vmem, size = 0x4000, scoped, tag = 'input window, operand 1, single buffered']
    #allocation7 [shape = 's32[1]{0}', space=sflag, size = 0x4, scoped, tag = 'scoped memory for tpu_custom_call.1']
    #allocation8 [shape = 'u8[16384]{0}', space=vmem, size = 0x4000, scoped, tag = 'input window, operand 2, single buffered']
    #allocation9 [shape = 'u8[16384]{0}', space=vmem, size = 0x4000, scoped, tag = 'input window, operand 3, single buffered']
    #allocation10 [shape = 's32[1]{0}', space=sflag, size = 0x4, scoped, tag = 'scoped memory for tpu_custom_call.1']
    #allocation11 [shape = 'u8[8192]{0}', space=vmem, size = 0x2000, scoped, tag = 'output window, operand 0']
    %9 = vsyncpa [#allocation4], 0
    %s10 = scalar_lea.sflag [#allocation4], 1
    %11 = vsyncpa %s10, 0
    %12 = vsyncpa [#allocation7], 0
    %13 = vsyncpa [#allocation10], 0
    %14 = vsyncpa [#allocation5], 0
    %s15 = scalar_lea.sflag [#allocation5], 1
    %16 = vsyncpa %s15, 0
    loop: start=0, step=1, limit=4
    $region2: #{tpu_custom_call.1} parent=1 // loop_pre_header
      _
    $region3: #{tpu_custom_call.1} parent=1 // loop_header
      %s18 = sphi 0, %s22
      %p19 = scmp.ge.s32.totalorder %s18, 4
      %s25 = sphi 0, %s37
      %s26 = sphi 0, %s33
      %s27 = sphi 0, %s25
      %s28 = sphi 0, %s26
      %s29 = sphi 0, %s27
      %s30 = sphi 0, %s28
      %s40 = sphi 0, %s42
      %s43 = sphi 0, %s40
      %s44 = sphi 0, %s43
      %s60 = sphi 0, %s44
      %s64 = sphi 0, %s64
      %s66 = sphi 0, %s64
      %s67 = sphi 0, %s66
      %s81 = sphi 0, %s67
      %s85 = sphi 0, %s85
      %s87 = sphi 0, %s85
      %s88 = sphi 0, %s87
      %s102 = sphi 0, %s88
      %s106 = sphi 0, %s106
      %s108 = sphi 0, %s106
      %s109 = sphi 0, %s108
      %s123 = sphi 0, %s109
      %s131 = sphi 0, %s133
      %s134 = sphi 0, %s131
      %s135 = sphi 0, %s134
      %s151 = sphi 0, %s135
    $region4: #{tpu_custom_call.1} parent=1 // loop_header_branch
      %21 = sbr.rel (%p19) target = $region8
    $region5: #{tpu_custom_call.1} parent=1 // loop_body
      %s23 = ssub.s32 %s18, 1
      %s24 = ssub.s32 %s18, 2
      %s31 = sadd.s32 1, %s26
      %p32 = scmp.ge.s32.totalorder %s31, 1
      %s33 = scalar_select %p32, 0, %s31
      %s34 = sadd.s32 1, %s25
      %s35 = scalar_select %p32, %s34, %s25
      %p36 = scmp.ge.s32.totalorder %s35, 2
      %s37 = scalar_select %p36, 0, %s35
      %s38 = ssub.s32 %s25, %s37
      %p39 = scmp.eq.s32.totalorder %s38, 0
      %s41 = sadd.s32 %s40, 1
      %s42 = scalar_select %p39, %s40, %s41
      %p45 = pneg %p39
      %p46 = scmp.eq.s32.totalorder %s18, 1
      %p47 = por %p45, %p46
      %p48 = scmp.ne.s32.totalorder %s40, %s43
      %p49 = scmp.eq.s32.totalorder %s18, 0
      %p50 = por %p48, %p49
      %p51 = scmp.ne.s32.totalorder %s40, %s43
      %p52 = scmp.eq.s32.totalorder %s23, 1
      %p53 = por %p51, %p52
      %p54 = scmp.ne.s32.totalorder %s43, %s44
      %p55 = scmp.eq.s32.totalorder %s23, 0
      %p56 = por %p54, %p55
      %p57 = scmp.ne.s32.totalorder %s43, %s44
      %p58 = scmp.eq.s32.totalorder %s24, 1
      %p59 = por %p57, %p58
      %p61 = scmp.ne.s32.totalorder %s44, %s60
      %p62 = scmp.eq.s32.totalorder %s24, 0
      %p63 = por %p61, %p62
      %s65 = sadd.s32 %s64, 1
      %p68 = scmp.eq.s32.totalorder %s18, 1
      %p69 = scmp.ne.s32.totalorder %s64, %s66
      %p70 = scmp.eq.s32.totalorder %s18, 0
      %p71 = por %p69, %p70
      %p72 = scmp.ne.s32.totalorder %s64, %s66
      %p73 = scmp.eq.s32.totalorder %s23, 1
      %p74 = por %p72, %p73
      %p75 = scmp.ne.s32.totalorder %s66, %s67
      %p76 = scmp.eq.s32.totalorder %s23, 0
      %p77 = por %p75, %p76
      %p78 = scmp.ne.s32.totalorder %s66, %s67
      %p79 = scmp.eq.s32.totalorder %s24, 1
      %p80 = por %p78, %p79
      %p82 = scmp.ne.s32.totalorder %s67, %s81
      %p83 = scmp.eq.s32.totalorder %s24, 0
      %p84 = por %p82, %p83
      %s86 = sadd.s32 %s85, 1
      %p89 = scmp.eq.s32.totalorder %s18, 1
      %p90 = scmp.ne.s32.totalorder %s85, %s87
      %p91 = scmp.eq.s32.totalorder %s18, 0
      %p92 = por %p90, %p91
      %p93 = scmp.ne.s32.totalorder %s85, %s87
      %p94 = scmp.eq.s32.totalorder %s23, 1
      %p95 = por %p93, %p94
      %p96 = scmp.ne.s32.totalorder %s87, %s88
      %p97 = scmp.eq.s32.totalorder %s23, 0
      %p98 = por %p96, %p97
      %p99 = scmp.ne.s32.totalorder %s87, %s88
      %p100 = scmp.eq.s32.totalorder %s24, 1
      %p101 = por %p99, %p100
      %p103 = scmp.ne.s32.totalorder %s88, %s102
      %p104 = scmp.eq.s32.totalorder %s24, 0
      %p105 = por %p103, %p104
      %s107 = sadd.s32 %s106, 1
      %p110 = scmp.eq.s32.totalorder %s18, 1
      %p111 = scmp.ne.s32.totalorder %s106, %s108
      %p112 = scmp.eq.s32.totalorder %s18, 0
      %p113 = por %p111, %p112
      %p114 = scmp.ne.s32.totalorder %s106, %s108
      %p115 = scmp.eq.s32.totalorder %s23, 1
      %p116 = por %p114, %p115
      %p117 = scmp.ne.s32.totalorder %s108, %s109
      %p118 = scmp.eq.s32.totalorder %s23, 0
      %p119 = por %p117, %p118
      %p120 = scmp.ne.s32.totalorder %s108, %s109
      %p121 = scmp.eq.s32.totalorder %s24, 1
      %p122 = por %p120, %p121
      %p124 = scmp.ne.s32.totalorder %s109, %s123
      %p125 = scmp.eq.s32.totalorder %s24, 0
      %p126 = por %p124, %p125
      %s127 = ssub.s32 %s25, %s37
      %s128 = ssub.s32 %s26, %s33
      %s129 = sor.u32 %s127, %s128
      %p130 = scmp.eq.s32.totalorder %s129, 0
      %s132 = sadd.s32 %s131, 1
      %s133 = scalar_select %p130, %s131, %s132
      %p136 = pneg %p130
      %p137 = scmp.eq.s32.totalorder %s18, 1
      %p138 = por %p136, %p137
      %p139 = scmp.ne.s32.totalorder %s131, %s134
      %p140 = scmp.eq.s32.totalorder %s18, 0
      %p141 = por %p139, %p140
      %p142 = scmp.ne.s32.totalorder %s131, %s134
      %p143 = scmp.eq.s32.totalorder %s23, 1
      %p144 = por %p142, %p143
      %p145 = scmp.ne.s32.totalorder %s134, %s135
      %p146 = scmp.eq.s32.totalorder %s23, 0
      %p147 = por %p145, %p146
      %p148 = scmp.ne.s32.totalorder %s134, %s135
      %p149 = scmp.eq.s32.totalorder %s24, 1
      %p150 = por %p148, %p149
      %p152 = scmp.ne.s32.totalorder %s135, %s151
      %p153 = scmp.eq.s32.totalorder %s24, 0
      %p154 = por %p152, %p153
      %p155 = scmp.le.s32.totalorder 1, %s18
      %p156 = scmp.lt.s32.totalorder %s18, 3
      %p157 = pnand %p155, %p156
      %p158 = pneg %p157
      // Predicated region
      $region9: #{tpu_custom_call.1} parent=5 // pred_check
        _
      $region10: #{tpu_custom_call.1} parent=5 // pred_check_branch
        %160 = sbr.rel (%p157) target = $region12
      $region11: #{tpu_custom_call.1} parent=5 // pred_region
        %s161 = ssub.s32 %s18, 1
        // Predicated region
        $region13: #{tpu_custom_call.1} parent=11 // pred_check
          %p162 = pneg %p77
        $region14: #{tpu_custom_call.1} parent=11 // pred_check_branch
          %164 = sbr.rel (%p162) target = $region16
        $region15: #{tpu_custom_call.1} parent=11 // pred_region
          %s166 = ssub.s32 512, 512
          %167 = vsyncadd [#allocation7], %s166
          %s168 = sshll.u32 [#allocation6], 4
          %s169 = int_to_ptr.vmem [resolvable:$true] %s168
          %174 = dma.hbm_to_vmem [thread:$0]  %s1, 512, %s169, [#allocation7], 128, 128, 8
        $region16: #{tpu_custom_call.1} parent=11 // pred_fallthru
          _
        // Predicated region
        $region17: #{tpu_custom_call.1} parent=11 // pred_check
          %p175 = pneg %p98
        $region18: #{tpu_custom_call.1} parent=11 // pred_check_branch
          %177 = sbr.rel (%p175) target = $region20
        $region19: #{tpu_custom_call.1} parent=11 // pred_region
          %s179 = ssub.s32 512, 512
          %180 = vsyncadd [#allocation7], %s179
          %s181 = sshll.u32 [#allocation8], 4
          %s182 = int_to_ptr.vmem [resolvable:$true] %s181
          %187 = dma.hbm_to_vmem [thread:$0]  %s2, 512, %s182, [#allocation7], 128, 128, 8
        $region20: #{tpu_custom_call.1} parent=11 // pred_fallthru
          _
        // Predicated region
        $region21: #{tpu_custom_call.1} parent=11 // pred_check
          %p188 = pneg %p119
        $region22: #{tpu_custom_call.1} parent=11 // pred_check_branch
          %190 = sbr.rel (%p188) target = $region24
        $region23: #{tpu_custom_call.1} parent=11 // pred_region
          %s192 = ssub.s32 512, 512
          %193 = vsyncadd [#allocation10], %s192
          %s194 = sshll.u32 [#allocation9], 4
          %s195 = int_to_ptr.vmem [resolvable:$true] %s194
          %200 = dma.hbm_to_vmem [thread:$0]  %s3, 512, %s195, [#allocation10], 128, 128, 8
        $region24: #{tpu_custom_call.1} parent=11 // pred_fallthru
          _
      $region12: #{tpu_custom_call.1} parent=5 // pred_fallthru
        _
      %p201 = scmp.lt.s32.totalorder %s18, 2
      // Predicated region
      $region25: #{tpu_custom_call.1} parent=5 // pred_check
        %p202 = pneg %p201
      $region26: #{tpu_custom_call.1} parent=5 // pred_check_branch
        %204 = sbr.rel (%p202) target = $region28
      $region27: #{tpu_custom_call.1} parent=5 // pred_region
        // Predicated region
        $region29: #{tpu_custom_call.1} parent=27 // pred_check
          %p205 = pneg %p50
        $region30: #{tpu_custom_call.1} parent=27 // pred_check_branch
          %207 = sbr.rel (%p205) target = $region32
        $region31: #{tpu_custom_call.1} parent=27 // pred_region
          %s208 = sand.u32 %s40, 1
          %s209 = scalar_lea.sflag [#allocation4], %s208
          %s210 = sand.u32 %s40, 1
          %s211 = smul.addr %s210, 8
          %s212 = scalar_lea.vmem [#allocation3], %s211
          %s214 = ssub.s32 128, 128
          %215 = vsyncadd %s209, %s214
          %s216 = smul.addr %s25, 128
          %s217 = scalar_lea.hbm %s0, %s216
          %s219 = sshll.u32 %s212, 4
          %s220 = int_to_ptr.vmem [resolvable:$true] %s219
          %222 = dma.hbm_to_vmem [thread:$0]  %s217, 128, %s220, %s209
        $region32: #{tpu_custom_call.1} parent=27 // pred_fallthru
          _
      $region28: #{tpu_custom_call.1} parent=5 // pred_fallthru
        _
      %p223 = scmp.le.s32.totalorder 1, %s18
      %p224 = scmp.lt.s32.totalorder %s18, 3
      %p225 = pnand %p223, %p224
      %p226 = pneg %p225
      // Predicated region
      $region33: #{tpu_custom_call.1} parent=5 // pred_check
        _
      $region34: #{tpu_custom_call.1} parent=5 // pred_check_branch
        %228 = sbr.rel (%p225) target = $region36
      $region35: #{tpu_custom_call.1} parent=5 // pred_region
        %s229 = ssub.s32 %s18, 1
        %s230 = sand.u32 %s43, 1
        %s231 = scalar_lea.sflag [#allocation4], %s230
        %s232 = sand.u32 %s43, 1
        %s233 = smul.addr %s232, 8
        %s234 = scalar_lea.vmem [#allocation3], %s233
        // Predicated region
        $region37: #{tpu_custom_call.1} parent=35 // pred_check
          %p235 = pneg %p56
        $region38: #{tpu_custom_call.1} parent=35 // pred_check_branch
          %237 = sbr.rel (%p235) target = $region40
        $region39: #{tpu_custom_call.1} parent=35 // pred_region
          %238 = dma.done %s231, 128
        $region40: #{tpu_custom_call.1} parent=35 // pred_fallthru
          _
        // Predicated region
        $region41: #{tpu_custom_call.1} parent=35 // pred_check
          %p239 = pneg %p77
        $region42: #{tpu_custom_call.1} parent=35 // pred_check_branch
          %241 = sbr.rel (%p239) target = $region44
        $region43: #{tpu_custom_call.1} parent=35 // pred_region
          %242 = dma.done [#allocation7], 512
        $region44: #{tpu_custom_call.1} parent=35 // pred_fallthru
          _
        // Predicated region
        $region45: #{tpu_custom_call.1} parent=35 // pred_check
          %p243 = pneg %p98
        $region46: #{tpu_custom_call.1} parent=35 // pred_check_branch
          %245 = sbr.rel (%p243) target = $region48
        $region47: #{tpu_custom_call.1} parent=35 // pred_region
          %246 = dma.done [#allocation7], 512
        $region48: #{tpu_custom_call.1} parent=35 // pred_fallthru
          _
        // Predicated region
        $region49: #{tpu_custom_call.1} parent=35 // pred_check
          %p247 = pneg %p119
        $region50: #{tpu_custom_call.1} parent=35 // pred_check_branch
          %249 = sbr.rel (%p247) target = $region52
        $region51: #{tpu_custom_call.1} parent=35 // pred_region
          %250 = dma.done [#allocation10], 512
        $region52: #{tpu_custom_call.1} parent=35 // pred_fallthru
          _
        %s251 = sand.u32 %s43, 1
        %s252 = scalar_lea.sflag [#allocation4], %s251
        %s253 = sand.u32 %s43, 1
        %s254 = smul.addr %s253, 8
        %s255 = scalar_lea.vmem [#allocation3], %s254
        %p256 = pneg %p56
        %p257 = pneg %p53
        %p258 = pneg %p77
        %p259 = pneg %p74
        %p260 = pneg %p98
        %p261 = pneg %p95
        %p262 = pneg %p119
        %p263 = pneg %p116
        %p264 = pneg %p147
        %p265 = pneg %p144
        %s266 = sand.u32 %s134, 1
        %s267 = scalar_lea.sflag [#allocation5], %s266
        %s268 = sand.u32 %s134, 1
        %s269 = smul.addr %s268, 8
        %s270 = scalar_lea.vmem [#allocation11], %s269
        %p271 = scmp.eq.s32.totalorder %s28, 0
        // Predicated region
        $region53: #{tpu_custom_call.1} parent=35 // pred_check
          %p272 = pneg %p271
        $region54: #{tpu_custom_call.1} parent=35 // pred_check_branch
          %274 = sbr.rel (%p272) target = $region56
        $region55: #{tpu_custom_call.1} parent=35 // pred_region
          %v275 = vld [vmem:[%s234] sm:$0xff]
          %v276 = vld [vmem:[#allocation8] sm:$0xff]
          %v277 = vld [vmem:[#allocation8 + $0x8] sm:$0xff]
          %v278 = vld [vmem:[#allocation8 + $0x10] sm:$0xff]
          %v279 = vld [vmem:[#allocation8 + $0x18] sm:$0xff]
          %vm280 = vcmask 261120
          %v282 = vsel %vm280, %v275, 0
          %284 = vmatprep.subr.mxu0 0.0
          %285 = vmatpush1.msra.mxu0 %v276
          %286 = vmatprep.subr.mxu0 0.0
          %287 = vmatpush1.msra.mxu0 %v277
          %288 = vmatprep.subr.mxu0 0.0
          %289 = vmatpush1.msra.mxu0 %v278
          %290 = vmatprep.subr.mxu0 0.0
          %291 = vmatpush1.msra.mxu0 %v279
          %292 = vmatprep.subr.mxu0 0.0
          %293 = vmatpush1.msra.mxu0 0.0
          %294 = vmatprep.subr.mxu0 0.0
          %295 = vmatpush1.msra.mxu0 0.0
          %296 = vmatprep.subr.mxu0 0.0
          %297 = vmatpush1.msra.mxu0 0.0
          %298 = vmatprep.subr.mxu0 0.0
          %299 = vmatpush1.msra.mxu0 0.0
          %300 = vmatprep.subr.mxu0 0.0
          %301 = vmatpush1.msra.mxu0 0.0
          %302 = vmatprep.subr.mxu0 0.0
          %303 = vmatpush1.msra.mxu0 0.0
          %304 = vmatprep.subr.mxu0 0.0
          %305 = vmatpush1.msra.mxu0 0.0
          %306 = vmatprep.subr.mxu0 0.0
          %307 = vmatpush1.msra.mxu0 0.0
          %308 = vmatprep.subr.mxu0 0.0
          %309 = vmatpush1.msra.mxu0 0.0
          %310 = vmatprep.subr.mxu0 0.0
          %311 = vmatpush1.msra.mxu0 0.0
          %312 = vmatprep.subr.mxu0 0.0
          %313 = vmatpush1.msra.mxu0 0.0
          %314 = vmatprep.subr.mxu0 0.0
          %315 = vmatpush1.msra.mxu0 0.0
          %316 = vmatprep.subr.mxu0 0.0
          %317 = vmatpush1.msra.mxu0 0.0
          %318 = vmatprep.subr.mxu0 0.0
          %319 = vmatpush1.msra.mxu0 0.0
          %320 = vmatprep.subr.mxu0 0.0
          %321 = vmatpush1.msra.mxu0 0.0
          %322 = vmatprep.subr.mxu0 0.0
          %323 = vmatpush1.msra.mxu0 0.0
          %324 = vmatprep.subr.mxu0 0.0
          %325 = vmatpush1.msra.mxu0 0.0
          %326 = vmatprep.subr.mxu0 0.0
          %327 = vmatpush1.msra.mxu0 0.0
          %328 = vmatprep.subr.mxu0 0.0
          %329 = vmatpush1.msra.mxu0 0.0
          %330 = vmatprep.subr.mxu0 0.0
          %331 = vmatpush1.msra.mxu0 0.0
          %332 = vmatprep.subr.mxu0 0.0
          %333 = vmatpush1.msra.mxu0 0.0
          %334 = vmatprep.subr.mxu0 0.0
          %335 = vmatpush1.msra.mxu0 0.0
          %336 = vmatprep.subr.mxu0 0.0
          %337 = vmatpush1.msra.mxu0 0.0
          %338 = vmatprep.subr.mxu0 0.0
          %339 = vmatpush1.msra.mxu0 0.0
          %340 = vmatprep.subr.mxu0 0.0
          %341 = vmatpush1.msra.mxu0 0.0
          %342 = vmatprep.subr.mxu0 0.0
          %343 = vmatpush1.msra.mxu0 0.0
          %344 = vmatprep.subr.mxu0 0.0
          %345 = vmatpush1.msra.mxu0 0.0
          %346 = vmatprep.subr.mxu0 0.0
          %347 = vmatpush1.msra.mxu0 0.0
          %348 = vmatprep.mubr.f32.mxu0 0.0
          %349 = vmatmul.mubr.f32.gmra.mrb[0].mxu0 %v282
          %v350 = vpop.f32.mrb[0].mxu0
          %v351 = vadd.f32 0.0, %v350
          %v352 = vpop.f32.mrb[0].mxu0
          %353 = vdwg.mxu0
          %vm354 = vcmask 523264
          %355 = vst.msk [vmem:[#allocation2] sm:$0xff] %vm354, %v351
        $region56: #{tpu_custom_call.1} parent=35 // pred_fallthru
          _
        %s356 = smul.u32 %s28, 8
        %s357 = scalar_lea.vmem %s234, %s356 [#allocation3]
        %v358 = vld [vmem:[%s357] sm:$0xff]
        %v359 = vld [vmem:[#allocation6] sm:$0xff]
        %v360 = vld [vmem:[#allocation6 + $0x8] sm:$0xff]
        %v361 = vld [vmem:[#allocation6 + $0x10] sm:$0xff]
        %v362 = vld [vmem:[#allocation6 + $0x18] sm:$0xff]
        %vm363 = vcmask 261120
        %v365 = vsel %vm363, %v358, 0
        %367 = vmatprep.subr.mxu0 0.0
        %368 = vmatpush1.msra.mxu0 %v359
        %369 = vmatprep.subr.mxu0 0.0
        %370 = vmatpush1.msra.mxu0 %v360
        %371 = vmatprep.subr.mxu0 0.0
        %372 = vmatpush1.msra.mxu0 %v361
        %373 = vmatprep.subr.mxu0 0.0
        %374 = vmatpush1.msra.mxu0 %v362
        %375 = vmatprep.subr.mxu0 0.0
        %376 = vmatpush1.msra.mxu0 0.0
        %377 = vmatprep.subr.mxu0 0.0
        %378 = vmatpush1.msra.mxu0 0.0
        %379 = vmatprep.subr.mxu0 0.0
        %380 = vmatpush1.msra.mxu0 0.0
        %381 = vmatprep.subr.mxu0 0.0
        %382 = vmatpush1.msra.mxu0 0.0
        %383 = vmatprep.subr.mxu0 0.0
        %384 = vmatpush1.msra.mxu0 0.0
        %385 = vmatprep.subr.mxu0 0.0
        %386 = vmatpush1.msra.mxu0 0.0
        %387 = vmatprep.subr.mxu0 0.0
        %388 = vmatpush1.msra.mxu0 0.0
        %389 = vmatprep.subr.mxu0 0.0
        %390 = vmatpush1.msra.mxu0 0.0
        %391 = vmatprep.subr.mxu0 0.0
        %392 = vmatpush1.msra.mxu0 0.0
        %393 = vmatprep.subr.mxu0 0.0
        %394 = vmatpush1.msra.mxu0 0.0
        %395 = vmatprep.subr.mxu0 0.0
        %396 = vmatpush1.msra.mxu0 0.0
        %397 = vmatprep.subr.mxu0 0.0
        %398 = vmatpush1.msra.mxu0 0.0
        %399 = vmatprep.subr.mxu0 0.0
        %400 = vmatpush1.msra.mxu0 0.0
        %401 = vmatprep.subr.mxu0 0.0
        %402 = vmatpush1.msra.mxu0 0.0
        %403 = vmatprep.subr.mxu0 0.0
        %404 = vmatpush1.msra.mxu0 0.0
        %405 = vmatprep.subr.mxu0 0.0
        %406 = vmatpush1.msra.mxu0 0.0
        %407 = vmatprep.subr.mxu0 0.0
        %408 = vmatpush1.msra.mxu0 0.0
        %409 = vmatprep.subr.mxu0 0.0
        %410 = vmatpush1.msra.mxu0 0.0
        %411 = vmatprep.subr.mxu0 0.0
        %412 = vmatpush1.msra.mxu0 0.0
        %413 = vmatprep.subr.mxu0 0.0
        %414 = vmatpush1.msra.mxu0 0.0
        %415 = vmatprep.subr.mxu0 0.0
        %416 = vmatpush1.msra.mxu0 0.0
        %417 = vmatprep.subr.mxu0 0.0
        %418 = vmatpush1.msra.mxu0 0.0
        %419 = vmatprep.subr.mxu0 0.0
        %420 = vmatpush1.msra.mxu0 0.0
        %421 = vmatprep.subr.mxu0 0.0
        %422 = vmatpush1.msra.mxu0 0.0
        %423 = vmatprep.subr.mxu0 0.0
        %424 = vmatpush1.msra.mxu0 0.0
        %425 = vmatprep.subr.mxu0 0.0
        %426 = vmatpush1.msra.mxu0 0.0
        %427 = vmatprep.subr.mxu0 0.0
        %428 = vmatpush1.msra.mxu0 0.0
        %429 = vmatprep.subr.mxu0 0.0
        %430 = vmatpush1.msra.mxu0 0.0
        %431 = vmatprep.mubr.f32.mxu0 0.0
        %432 = vmatmul.mubr.f32.gmra.mrb[0].mxu0 %v365
        %v433 = vpop.f32.mrb[0].mxu0
        %v434 = vadd.f32 0.0, %v433
        %v435 = vpop.f32.mrb[0].mxu0
        %436 = vdwg.mxu0
        %v437 = vld [vmem:[#allocation2] sm:$0xff]
        %vm438 = vcmask 64512
        %v440 = vsel %vm438, %v434, 0
        %v443 = vsel %vm438, %v437, 0
        %445 = vmatprep.subr.mxu0 0.0
        %446 = vmatpush1.xpose.msra.mxu0 %v443
        %447 = vmatprep.subr.mxu0 0.0
        %448 = vmatpush1.xpose.msra.mxu0 0.0
        %449 = vmatprep.subr.mxu0 0.0
        %450 = vmatpush1.xpose.msra.mxu0 0.0
        %451 = vmatprep.subr.mxu0 0.0
        %452 = vmatpush1.xpose.msra.mxu0 0.0
        %453 = vmatprep.subr.mxu0 0.0
        %454 = vmatpush1.xpose.msra.mxu0 0.0
        %455 = vmatprep.subr.mxu0 0.0
        %456 = vmatpush1.xpose.msra.mxu0 0.0
        %457 = vmatprep.subr.mxu0 0.0
        %458 = vmatpush1.xpose.msra.mxu0 0.0
        %459 = vmatprep.subr.mxu0 0.0
        %460 = vmatpush1.xpose.msra.mxu0 0.0
        %461 = vmatprep.subr.mxu0 0.0
        %462 = vmatpush1.xpose.msra.mxu0 0.0
        %463 = vmatprep.subr.mxu0 0.0
        %464 = vmatpush1.xpose.msra.mxu0 0.0
        %465 = vmatprep.subr.mxu0 0.0
        %466 = vmatpush1.xpose.msra.mxu0 0.0
        %467 = vmatprep.subr.mxu0 0.0
        %468 = vmatpush1.xpose.msra.mxu0 0.0
        %469 = vmatprep.subr.mxu0 0.0
        %470 = vmatpush1.xpose.msra.mxu0 0.0
        %471 = vmatprep.subr.mxu0 0.0
        %472 = vmatpush1.xpose.msra.mxu0 0.0
        %473 = vmatprep.subr.mxu0 0.0
        %474 = vmatpush1.xpose.msra.mxu0 0.0
        %475 = vmatprep.subr.mxu0 0.0
        %476 = vmatpush1.xpose.msra.mxu0 0.0
        %477 = vmatprep.subr.mxu0 0.0
        %478 = vmatpush1.xpose.msra.mxu0 0.0
        %479 = vmatprep.subr.mxu0 0.0
        %480 = vmatpush1.xpose.msra.mxu0 0.0
        %481 = vmatprep.subr.mxu0 0.0
        %482 = vmatpush1.xpose.msra.mxu0 0.0
        %483 = vmatprep.subr.mxu0 0.0
        %484 = vmatpush1.xpose.msra.mxu0 0.0
        %485 = vmatprep.subr.mxu0 0.0
        %486 = vmatpush1.xpose.msra.mxu0 0.0
        %487 = vmatprep.subr.mxu0 0.0
        %488 = vmatpush1.xpose.msra.mxu0 0.0
        %489 = vmatprep.subr.mxu0 0.0
        %490 = vmatpush1.xpose.msra.mxu0 0.0
        %491 = vmatprep.subr.mxu0 0.0
        %492 = vmatpush1.xpose.msra.mxu0 0.0
        %493 = vmatprep.subr.mxu0 0.0
        %494 = vmatpush1.xpose.msra.mxu0 0.0
        %495 = vmatprep.subr.mxu0 0.0
        %496 = vmatpush1.xpose.msra.mxu0 0.0
        %497 = vmatprep.subr.mxu0 0.0
        %498 = vmatpush1.xpose.msra.mxu0 0.0
        %499 = vmatprep.subr.mxu0 0.0
        %500 = vmatpush1.xpose.msra.mxu0 0.0
        %501 = vmatprep.subr.mxu0 0.0
        %502 = vmatpush1.xpose.msra.mxu0 0.0
        %503 = vmatprep.subr.mxu0 0.0
        %504 = vmatpush1.xpose.msra.mxu0 0.0
        %505 = vmatprep.subr.mxu0 0.0
        %506 = vmatpush1.xpose.msra.mxu0 0.0
        %507 = vmatprep.subr.mxu0 0.0
        %508 = vmatpush1.xpose.msra.mxu0 0.0
        %509 = vmatprep.mubr.f32.mxu0 0.0
        %510 = vmatmul.mubr.f32.gmra.mrb[0].mxu0 %v440
        %v511 = vpop.f32.mrb[0].mxu0
        %v512 = vadd.f32 0.0, %v511
        %v513 = vpop.f32.mrb[0].mxu0
        %514 = vdwg.mxu0
        %v515 = vsel %vm438, %v512, -inf
        %516 = vmax.xlane.f32.xlu0 %v515
        %v517 = vpop.xlane.xlu0 %516
        %v518 = vsub.f32 %v512, %v517
        %v519 = vmul.f32 %v518, 1.442695
        %v520 = vpow.pop %v519
        %v521 = vsel %vm438, %v520, 0.0
        %522 = vadd.xlane.f32.xlu0 %v521
        %v523 = vpop.xlane.xlu0 %522
        %524 = vrot.lane.b32.xlu0 %v437, 96
        %v525 = vpop.permute.xlu0 %524
        %v528 = vsel %vm438, %v520, 0
        %530 = vmatprep.subr.mxu0 0.0
        %531 = vmatpush1.msra.mxu0 %v525
        %532 = vmatprep.subr.mxu0 0.0
        %533 = vmatpush1.msra.mxu0 0.0
        %534 = vmatprep.subr.mxu0 0.0
        %535 = vmatpush1.msra.mxu0 0.0
        %536 = vmatprep.subr.mxu0 0.0
        %537 = vmatpush1.msra.mxu0 0.0
        %538 = vmatprep.subr.mxu0 0.0
        %539 = vmatpush1.msra.mxu0 0.0
        %540 = vmatprep.subr.mxu0 0.0
        %541 = vmatpush1.msra.mxu0 0.0
        %542 = vmatprep.subr.mxu0 0.0
        %543 = vmatpush1.msra.mxu0 0.0
        %544 = vmatprep.subr.mxu0 0.0
        %545 = vmatpush1.msra.mxu0 0.0
        %546 = vmatprep.subr.mxu0 0.0
        %547 = vmatpush1.msra.mxu0 0.0
        %548 = vmatprep.subr.mxu0 0.0
        %549 = vmatpush1.msra.mxu0 0.0
        %550 = vmatprep.subr.mxu0 0.0
        %551 = vmatpush1.msra.mxu0 0.0
        %552 = vmatprep.subr.mxu0 0.0
        %553 = vmatpush1.msra.mxu0 0.0
        %554 = vmatprep.subr.mxu0 0.0
        %555 = vmatpush1.msra.mxu0 0.0
        %556 = vmatprep.subr.mxu0 0.0
        %557 = vmatpush1.msra.mxu0 0.0
        %558 = vmatprep.subr.mxu0 0.0
        %559 = vmatpush1.msra.mxu0 0.0
        %560 = vmatprep.subr.mxu0 0.0
        %561 = vmatpush1.msra.mxu0 0.0
        %562 = vmatprep.subr.mxu0 0.0
        %563 = vmatpush1.msra.mxu0 0.0
        %564 = vmatprep.subr.mxu0 0.0
        %565 = vmatpush1.msra.mxu0 0.0
        %566 = vmatprep.subr.mxu0 0.0
        %567 = vmatpush1.msra.mxu0 0.0
        %568 = vmatprep.subr.mxu0 0.0
        %569 = vmatpush1.msra.mxu0 0.0
        %570 = vmatprep.subr.mxu0 0.0
        %571 = vmatpush1.msra.mxu0 0.0
        %572 = vmatprep.subr.mxu0 0.0
        %573 = vmatpush1.msra.mxu0 0.0
        %574 = vmatprep.subr.mxu0 0.0
        %575 = vmatpush1.msra.mxu0 0.0
        %576 = vmatprep.subr.mxu0 0.0
        %577 = vmatpush1.msra.mxu0 0.0
        %578 = vmatprep.subr.mxu0 0.0
        %579 = vmatpush1.msra.mxu0 0.0
        %580 = vmatprep.subr.mxu0 0.0
        %581 = vmatpush1.msra.mxu0 0.0
        %582 = vmatprep.subr.mxu0 0.0
        %583 = vmatpush1.msra.mxu0 0.0
        %584 = vmatprep.subr.mxu0 0.0
        %585 = vmatpush1.msra.mxu0 0.0
        %586 = vmatprep.subr.mxu0 0.0
        %587 = vmatpush1.msra.mxu0 0.0
        %588 = vmatprep.subr.mxu0 0.0
        %589 = vmatpush1.msra.mxu0 0.0
        %590 = vmatprep.subr.mxu0 0.0
        %591 = vmatpush1.msra.mxu0 0.0
        %592 = vmatprep.subr.mxu0 0.0
        %593 = vmatpush1.msra.mxu0 0.0
        %594 = vmatprep.mubr.f32.mxu0 0.0
        %595 = vmatmul.mubr.f32.gmra.mrb[0].mxu0 %v528
        %v596 = vpop.f32.mrb[0].mxu0
        %v597 = vadd.f32 0.0, %v596
        %v598 = vpop.f32.mrb[0].mxu0
        %599 = vdwg.mxu0
        %v600 = vrcp.pop %v523
        %v601 = vmul.f32 %v597, %v600
        %602 = vrot.lane.b32.xlu0 %v434, 120
        %v603 = vpop.permute.xlu0 %602
        %604 = vrot.lane.b32.xlu0 %v437, 120
        %v605 = vpop.permute.xlu0 %604
        %v606 = vsel %vm438, %v603, 0
        %v608 = vsel %vm438, %v605, 0
        %610 = vmatprep.subr.mxu0 0.0
        %611 = vmatpush1.xpose.msra.mxu0 %v608
        %612 = vmatprep.subr.mxu0 0.0
        %613 = vmatpush1.xpose.msra.mxu0 0.0
        %614 = vmatprep.subr.mxu0 0.0
        %615 = vmatpush1.xpose.msra.mxu0 0.0
        %616 = vmatprep.subr.mxu0 0.0
        %617 = vmatpush1.xpose.msra.mxu0 0.0
        %618 = vmatprep.subr.mxu0 0.0
        %619 = vmatpush1.xpose.msra.mxu0 0.0
        %620 = vmatprep.subr.mxu0 0.0
        %621 = vmatpush1.xpose.msra.mxu0 0.0
        %622 = vmatprep.subr.mxu0 0.0
        %623 = vmatpush1.xpose.msra.mxu0 0.0
        %624 = vmatprep.subr.mxu0 0.0
        %625 = vmatpush1.xpose.msra.mxu0 0.0
        %626 = vmatprep.subr.mxu0 0.0
        %627 = vmatpush1.xpose.msra.mxu0 0.0
        %628 = vmatprep.subr.mxu0 0.0
        %629 = vmatpush1.xpose.msra.mxu0 0.0
        %630 = vmatprep.subr.mxu0 0.0
        %631 = vmatpush1.xpose.msra.mxu0 0.0
        %632 = vmatprep.subr.mxu0 0.0
        %633 = vmatpush1.xpose.msra.mxu0 0.0
        %634 = vmatprep.subr.mxu0 0.0
        %635 = vmatpush1.xpose.msra.mxu0 0.0
        %636 = vmatprep.subr.mxu0 0.0
        %637 = vmatpush1.xpose.msra.mxu0 0.0
        %638 = vmatprep.subr.mxu0 0.0
        %639 = vmatpush1.xpose.msra.mxu0 0.0
        %640 = vmatprep.subr.mxu0 0.0
        %641 = vmatpush1.xpose.msra.mxu0 0.0
        %642 = vmatprep.subr.mxu0 0.0
        %643 = vmatpush1.xpose.msra.mxu0 0.0
        %644 = vmatprep.subr.mxu0 0.0
        %645 = vmatpush1.xpose.msra.mxu0 0.0
        %646 = vmatprep.subr.mxu0 0.0
        %647 = vmatpush1.xpose.msra.mxu0 0.0
        %648 = vmatprep.subr.mxu0 0.0
        %649 = vmatpush1.xpose.msra.mxu0 0.0
        %650 = vmatprep.subr.mxu0 0.0
        %651 = vmatpush1.xpose.msra.mxu0 0.0
        %652 = vmatprep.subr.mxu0 0.0
        %653 = vmatpush1.xpose.msra.mxu0 0.0
        %654 = vmatprep.subr.mxu0 0.0
        %655 = vmatpush1.xpose.msra.mxu0 0.0
        %656 = vmatprep.subr.mxu0 0.0
        %657 = vmatpush1.xpose.msra.mxu0 0.0
        %658 = vmatprep.subr.mxu0 0.0
        %659 = vmatpush1.xpose.msra.mxu0 0.0
        %660 = vmatprep.subr.mxu0 0.0
        %661 = vmatpush1.xpose.msra.mxu0 0.0
        %662 = vmatprep.subr.mxu0 0.0
        %663 = vmatpush1.xpose.msra.mxu0 0.0
        %664 = vmatprep.subr.mxu0 0.0
        %665 = vmatpush1.xpose.msra.mxu0 0.0
        %666 = vmatprep.subr.mxu0 0.0
        %667 = vmatpush1.xpose.msra.mxu0 0.0
        %668 = vmatprep.subr.mxu0 0.0
        %669 = vmatpush1.xpose.msra.mxu0 0.0
        %670 = vmatprep.subr.mxu0 0.0
        %671 = vmatpush1.xpose.msra.mxu0 0.0
        %672 = vmatprep.subr.mxu0 0.0
        %673 = vmatpush1.xpose.msra.mxu0 0.0
        %674 = vmatprep.mubr.f32.mxu0 0.0
        %675 = vmatmul.mubr.f32.gmra.mrb[0].mxu0 %v606
        %v676 = vpop.f32.mrb[0].mxu0
        %v677 = vadd.f32 0.0, %v676
        %v678 = vpop.f32.mrb[0].mxu0
        %679 = vdwg.mxu0
        %v680 = vsel %vm438, %v677, -inf
        %681 = vmax.xlane.f32.xlu0 %v680
        %v682 = vpop.xlane.xlu0 %681
        %v683 = vsub.f32 %v677, %v682
        %v684 = vmul.f32 %v683, 1.442695
        %v685 = vpow.pop %v684
        %v686 = vsel %vm438, %v685, 0.0
        %687 = vadd.xlane.f32.xlu0 %v686
        %v688 = vpop.xlane.xlu0 %687
        %689 = vrot.lane.b32.xlu0 %v437, 88
        %v690 = vpop.permute.xlu0 %689
        %v693 = vsel %vm438, %v685, 0
        %695 = vmatprep.subr.mxu0 0.0
        %696 = vmatpush1.msra.mxu0 %v690
        %697 = vmatprep.subr.mxu0 0.0
        %698 = vmatpush1.msra.mxu0 0.0
        %699 = vmatprep.subr.mxu0 0.0
        %700 = vmatpush1.msra.mxu0 0.0
        %701 = vmatprep.subr.mxu0 0.0
        %702 = vmatpush1.msra.mxu0 0.0
        %703 = vmatprep.subr.mxu0 0.0
        %704 = vmatpush1.msra.mxu0 0.0
        %705 = vmatprep.subr.mxu0 0.0
        %706 = vmatpush1.msra.mxu0 0.0
        %707 = vmatprep.subr.mxu0 0.0
        %708 = vmatpush1.msra.mxu0 0.0
        %709 = vmatprep.subr.mxu0 0.0
        %710 = vmatpush1.msra.mxu0 0.0
        %711 = vmatprep.subr.mxu0 0.0
        %712 = vmatpush1.msra.mxu0 0.0
        %713 = vmatprep.subr.mxu0 0.0
        %714 = vmatpush1.msra.mxu0 0.0
        %715 = vmatprep.subr.mxu0 0.0
        %716 = vmatpush1.msra.mxu0 0.0
        %717 = vmatprep.subr.mxu0 0.0
        %718 = vmatpush1.msra.mxu0 0.0
        %719 = vmatprep.subr.mxu0 0.0
        %720 = vmatpush1.msra.mxu0 0.0
        %721 = vmatprep.subr.mxu0 0.0
        %722 = vmatpush1.msra.mxu0 0.0
        %723 = vmatprep.subr.mxu0 0.0
        %724 = vmatpush1.msra.mxu0 0.0
        %725 = vmatprep.subr.mxu0 0.0
        %726 = vmatpush1.msra.mxu0 0.0
        %727 = vmatprep.subr.mxu0 0.0
        %728 = vmatpush1.msra.mxu0 0.0
        %729 = vmatprep.subr.mxu0 0.0
        %730 = vmatpush1.msra.mxu0 0.0
        %731 = vmatprep.subr.mxu0 0.0
        %732 = vmatpush1.msra.mxu0 0.0
        %733 = vmatprep.subr.mxu0 0.0
        %734 = vmatpush1.msra.mxu0 0.0
        %735 = vmatprep.subr.mxu0 0.0
        %736 = vmatpush1.msra.mxu0 0.0
        %737 = vmatprep.subr.mxu0 0.0
        %738 = vmatpush1.msra.mxu0 0.0
        %739 = vmatprep.subr.mxu0 0.0
        %740 = vmatpush1.msra.mxu0 0.0
        %741 = vmatprep.subr.mxu0 0.0
        %742 = vmatpush1.msra.mxu0 0.0
        %743 = vmatprep.subr.mxu0 0.0
        %744 = vmatpush1.msra.mxu0 0.0
        %745 = vmatprep.subr.mxu0 0.0
        %746 = vmatpush1.msra.mxu0 0.0
        %747 = vmatprep.subr.mxu0 0.0
        %748 = vmatpush1.msra.mxu0 0.0
        %749 = vmatprep.subr.mxu0 0.0
        %750 = vmatpush1.msra.mxu0 0.0
        %751 = vmatprep.subr.mxu0 0.0
        %752 = vmatpush1.msra.mxu0 0.0
        %753 = vmatprep.subr.mxu0 0.0
        %754 = vmatpush1.msra.mxu0 0.0
        %755 = vmatprep.subr.mxu0 0.0
        %756 = vmatpush1.msra.mxu0 0.0
        %757 = vmatprep.subr.mxu0 0.0
        %758 = vmatpush1.msra.mxu0 0.0
        %759 = vmatprep.mubr.f32.mxu0 0.0
        %760 = vmatmul.mubr.f32.gmra.mrb[0].mxu0 %v693
        %v761 = vpop.f32.mrb[0].mxu0
        %v762 = vadd.f32 0.0, %v761
        %v763 = vpop.f32.mrb[0].mxu0
        %764 = vdwg.mxu0
        %v765 = vrcp.pop %v688
        %v766 = vmul.f32 %v762, %v765
        %767 = vrot.lane.b32.xlu0 %v434, 112
        %v768 = vpop.permute.xlu0 %767
        %769 = vrot.lane.b32.xlu0 %v437, 112
        %v770 = vpop.permute.xlu0 %769
        %v771 = vsel %vm438, %v768, 0
        %v773 = vsel %vm438, %v770, 0
        %775 = vmatprep.subr.mxu0 0.0
        %776 = vmatpush1.xpose.msra.mxu0 %v773
        %777 = vmatprep.subr.mxu0 0.0
        %778 = vmatpush1.xpose.msra.mxu0 0.0
        %779 = vmatprep.subr.mxu0 0.0
        %780 = vmatpush1.xpose.msra.mxu0 0.0
        %781 = vmatprep.subr.mxu0 0.0
        %782 = vmatpush1.xpose.msra.mxu0 0.0
        %783 = vmatprep.subr.mxu0 0.0
        %784 = vmatpush1.xpose.msra.mxu0 0.0
        %785 = vmatprep.subr.mxu0 0.0
        %786 = vmatpush1.xpose.msra.mxu0 0.0
        %787 = vmatprep.subr.mxu0 0.0
        %788 = vmatpush1.xpose.msra.mxu0 0.0
        %789 = vmatprep.subr.mxu0 0.0
        %790 = vmatpush1.xpose.msra.mxu0 0.0
        %791 = vmatprep.subr.mxu0 0.0
        %792 = vmatpush1.xpose.msra.mxu0 0.0
        %793 = vmatprep.subr.mxu0 0.0
        %794 = vmatpush1.xpose.msra.mxu0 0.0
        %795 = vmatprep.subr.mxu0 0.0
        %796 = vmatpush1.xpose.msra.mxu0 0.0
        %797 = vmatprep.subr.mxu0 0.0
        %798 = vmatpush1.xpose.msra.mxu0 0.0
        %799 = vmatprep.subr.mxu0 0.0
        %800 = vmatpush1.xpose.msra.mxu0 0.0
        %801 = vmatprep.subr.mxu0 0.0
        %802 = vmatpush1.xpose.msra.mxu0 0.0
        %803 = vmatprep.subr.mxu0 0.0
        %804 = vmatpush1.xpose.msra.mxu0 0.0
        %805 = vmatprep.subr.mxu0 0.0
        %806 = vmatpush1.xpose.msra.mxu0 0.0
        %807 = vmatprep.subr.mxu0 0.0
        %808 = vmatpush1.xpose.msra.mxu0 0.0
        %809 = vmatprep.subr.mxu0 0.0
        %810 = vmatpush1.xpose.msra.mxu0 0.0
        %811 = vmatprep.subr.mxu0 0.0
        %812 = vmatpush1.xpose.msra.mxu0 0.0
        %813 = vmatprep.subr.mxu0 0.0
        %814 = vmatpush1.xpose.msra.mxu0 0.0
        %815 = vmatprep.subr.mxu0 0.0
        %816 = vmatpush1.xpose.msra.mxu0 0.0
        %817 = vmatprep.subr.mxu0 0.0
        %818 = vmatpush1.xpose.msra.mxu0 0.0
        %819 = vmatprep.subr.mxu0 0.0
        %820 = vmatpush1.xpose.msra.mxu0 0.0
        %821 = vmatprep.subr.mxu0 0.0
        %822 = vmatpush1.xpose.msra.mxu0 0.0
        %823 = vmatprep.subr.mxu0 0.0
        %824 = vmatpush1.xpose.msra.mxu0 0.0
        %825 = vmatprep.subr.mxu0 0.0
        %826 = vmatpush1.xpose.msra.mxu0 0.0
        %827 = vmatprep.subr.mxu0 0.0
        %828 = vmatpush1.xpose.msra.mxu0 0.0
        %829 = vmatprep.subr.mxu0 0.0
        %830 = vmatpush1.xpose.msra.mxu0 0.0
        %831 = vmatprep.subr.mxu0 0.0
        %832 = vmatpush1.xpose.msra.mxu0 0.0
        %833 = vmatprep.subr.mxu0 0.0
        %834 = vmatpush1.xpose.msra.mxu0 0.0
        %835 = vmatprep.subr.mxu0 0.0
        %836 = vmatpush1.xpose.msra.mxu0 0.0
        %837 = vmatprep.subr.mxu0 0.0
        %838 = vmatpush1.xpose.msra.mxu0 0.0
        %839 = vmatprep.mubr.f32.mxu0 0.0
        %840 = vmatmul.mubr.f32.gmra.mrb[0].mxu0 %v771
        %v841 = vpop.f32.mrb[0].mxu0
        %v842 = vadd.f32 0.0, %v841
        %v843 = vpop.f32.mrb[0].mxu0
        %844 = vdwg.mxu0
        %v845 = vsel %vm438, %v842, -inf
        %846 = vmax.xlane.f32.xlu0 %v845
        %v847 = vpop.xlane.xlu0 %846
        %v848 = vsub.f32 %v842, %v847
        %v849 = vmul.f32 %v848, 1.442695
        %v850 = vpow.pop %v849
        %v851 = vsel %vm438, %v850, 0.0
        %852 = vadd.xlane.f32.xlu0 %v851
        %v853 = vpop.xlane.xlu0 %852
        %854 = vrot.lane.b32.xlu0 %v437, 80
        %v855 = vpop.permute.xlu0 %854
        %v858 = vsel %vm438, %v850, 0
        %860 = vmatprep.subr.mxu0 0.0
        %861 = vmatpush1.msra.mxu0 %v855
        %862 = vmatprep.subr.mxu0 0.0
        %863 = vmatpush1.msra.mxu0 0.0
        %864 = vmatprep.subr.mxu0 0.0
        %865 = vmatpush1.msra.mxu0 0.0
        %866 = vmatprep.subr.mxu0 0.0
        %867 = vmatpush1.msra.mxu0 0.0
        %868 = vmatprep.subr.mxu0 0.0
        %869 = vmatpush1.msra.mxu0 0.0
        %870 = vmatprep.subr.mxu0 0.0
        %871 = vmatpush1.msra.mxu0 0.0
        %872 = vmatprep.subr.mxu0 0.0
        %873 = vmatpush1.msra.mxu0 0.0
        %874 = vmatprep.subr.mxu0 0.0
        %875 = vmatpush1.msra.mxu0 0.0
        %876 = vmatprep.subr.mxu0 0.0
        %877 = vmatpush1.msra.mxu0 0.0
        %878 = vmatprep.subr.mxu0 0.0
        %879 = vmatpush1.msra.mxu0 0.0
        %880 = vmatprep.subr.mxu0 0.0
        %881 = vmatpush1.msra.mxu0 0.0
        %882 = vmatprep.subr.mxu0 0.0
        %883 = vmatpush1.msra.mxu0 0.0
        %884 = vmatprep.subr.mxu0 0.0
        %885 = vmatpush1.msra.mxu0 0.0
        %886 = vmatprep.subr.mxu0 0.0
        %887 = vmatpush1.msra.mxu0 0.0
        %888 = vmatprep.subr.mxu0 0.0
        %889 = vmatpush1.msra.mxu0 0.0
        %890 = vmatprep.subr.mxu0 0.0
        %891 = vmatpush1.msra.mxu0 0.0
        %892 = vmatprep.subr.mxu0 0.0
        %893 = vmatpush1.msra.mxu0 0.0
        %894 = vmatprep.subr.mxu0 0.0
        %895 = vmatpush1.msra.mxu0 0.0
        %896 = vmatprep.subr.mxu0 0.0
        %897 = vmatpush1.msra.mxu0 0.0
        %898 = vmatprep.subr.mxu0 0.0
        %899 = vmatpush1.msra.mxu0 0.0
        %900 = vmatprep.subr.mxu0 0.0
        %901 = vmatpush1.msra.mxu0 0.0
        %902 = vmatprep.subr.mxu0 0.0
        %903 = vmatpush1.msra.mxu0 0.0
        %904 = vmatprep.subr.mxu0 0.0
        %905 = vmatpush1.msra.mxu0 0.0
        %906 = vmatprep.subr.mxu0 0.0
        %907 = vmatpush1.msra.mxu0 0.0
        %908 = vmatprep.subr.mxu0 0.0
        %909 = vmatpush1.msra.mxu0 0.0
        %910 = vmatprep.subr.mxu0 0.0
        %911 = vmatpush1.msra.mxu0 0.0
        %912 = vmatprep.subr.mxu0 0.0
        %913 = vmatpush1.msra.mxu0 0.0
        %914 = vmatprep.subr.mxu0 0.0
        %915 = vmatpush1.msra.mxu0 0.0
        %916 = vmatprep.subr.mxu0 0.0
        %917 = vmatpush1.msra.mxu0 0.0
        %918 = vmatprep.subr.mxu0 0.0
        %919 = vmatpush1.msra.mxu0 0.0
        %920 = vmatprep.subr.mxu0 0.0
        %921 = vmatpush1.msra.mxu0 0.0
        %922 = vmatprep.subr.mxu0 0.0
        %923 = vmatpush1.msra.mxu0 0.0
        %924 = vmatprep.mubr.f32.mxu0 0.0
        %925 = vmatmul.mubr.f32.gmra.mrb[0].mxu0 %v858
        %v926 = vpop.f32.mrb[0].mxu0
        %v927 = vadd.f32 0.0, %v926
        %v928 = vpop.f32.mrb[0].mxu0
        %929 = vdwg.mxu0
        %v930 = vrcp.pop %v853
        %v931 = vmul.f32 %v927, %v930
        %932 = vrot.lane.b32.xlu0 %v434, 104
        %v933 = vpop.permute.xlu0 %932
        %934 = vrot.lane.b32.xlu0 %v437, 104
        %v935 = vpop.permute.xlu0 %934
        %v936 = vsel %vm438, %v933, 0
        %v938 = vsel %vm438, %v935, 0
        %940 = vmatprep.subr.mxu0 0.0
        %941 = vmatpush1.xpose.msra.mxu0 %v938
        %942 = vmatprep.subr.mxu0 0.0
        %943 = vmatpush1.xpose.msra.mxu0 0.0
        %944 = vmatprep.subr.mxu0 0.0
        %945 = vmatpush1.xpose.msra.mxu0 0.0
        %946 = vmatprep.subr.mxu0 0.0
        %947 = vmatpush1.xpose.msra.mxu0 0.0
        %948 = vmatprep.subr.mxu0 0.0
        %949 = vmatpush1.xpose.msra.mxu0 0.0
        %950 = vmatprep.subr.mxu0 0.0
        %951 = vmatpush1.xpose.msra.mxu0 0.0
        %952 = vmatprep.subr.mxu0 0.0
        %953 = vmatpush1.xpose.msra.mxu0 0.0
        %954 = vmatprep.subr.mxu0 0.0
        %955 = vmatpush1.xpose.msra.mxu0 0.0
        %956 = vmatprep.subr.mxu0 0.0
        %957 = vmatpush1.xpose.msra.mxu0 0.0
        %958 = vmatprep.subr.mxu0 0.0
        %959 = vmatpush1.xpose.msra.mxu0 0.0
        %960 = vmatprep.subr.mxu0 0.0
        %961 = vmatpush1.xpose.msra.mxu0 0.0
        %962 = vmatprep.subr.mxu0 0.0
        %963 = vmatpush1.xpose.msra.mxu0 0.0
        %964 = vmatprep.subr.mxu0 0.0
        %965 = vmatpush1.xpose.msra.mxu0 0.0
        %966 = vmatprep.subr.mxu0 0.0
        %967 = vmatpush1.xpose.msra.mxu0 0.0
        %968 = vmatprep.subr.mxu0 0.0
        %969 = vmatpush1.xpose.msra.mxu0 0.0
        %970 = vmatprep.subr.mxu0 0.0
        %971 = vmatpush1.xpose.msra.mxu0 0.0
        %972 = vmatprep.subr.mxu0 0.0
        %973 = vmatpush1.xpose.msra.mxu0 0.0
        %974 = vmatprep.subr.mxu0 0.0
        %975 = vmatpush1.xpose.msra.mxu0 0.0
        %976 = vmatprep.subr.mxu0 0.0
        %977 = vmatpush1.xpose.msra.mxu0 0.0
        %978 = vmatprep.subr.mxu0 0.0
        %979 = vmatpush1.xpose.msra.mxu0 0.0
        %980 = vmatprep.subr.mxu0 0.0
        %981 = vmatpush1.xpose.msra.mxu0 0.0
        %982 = vmatprep.subr.mxu0 0.0
        %983 = vmatpush1.xpose.msra.mxu0 0.0
        %984 = vmatprep.subr.mxu0 0.0
        %985 = vmatpush1.xpose.msra.mxu0 0.0
        %986 = vmatprep.subr.mxu0 0.0
        %987 = vmatpush1.xpose.msra.mxu0 0.0
        %988 = vmatprep.subr.mxu0 0.0
        %989 = vmatpush1.xpose.msra.mxu0 0.0
        %990 = vmatprep.subr.mxu0 0.0
        %991 = vmatpush1.xpose.msra.mxu0 0.0
        %992 = vmatprep.subr.mxu0 0.0
        %993 = vmatpush1.xpose.msra.mxu0 0.0
        %994 = vmatprep.subr.mxu0 0.0
        %995 = vmatpush1.xpose.msra.mxu0 0.0
        %996 = vmatprep.subr.mxu0 0.0
        %997 = vmatpush1.xpose.msra.mxu0 0.0
        %998 = vmatprep.subr.mxu0 0.0
        %999 = vmatpush1.xpose.msra.mxu0 0.0
        %1000 = vmatprep.subr.mxu0 0.0
        %1001 = vmatpush1.xpose.msra.mxu0 0.0
        %1002 = vmatprep.subr.mxu0 0.0
        %1003 = vmatpush1.xpose.msra.mxu0 0.0
        %1004 = vmatprep.mubr.f32.mxu0 0.0
        %1005 = vmatmul.mubr.f32.gmra.mrb[0].mxu0 %v936
        %v1006 = vpop.f32.mrb[0].mxu0
        %v1007 = vadd.f32 0.0, %v1006
        %v1008 = vpop.f32.mrb[0].mxu0
        %1009 = vdwg.mxu0
        %v1010 = vsel %vm438, %v1007, -inf
        %1011 = vmax.xlane.f32.xlu0 %v1010
        %v1012 = vpop.xlane.xlu0 %1011
        %v1013 = vsub.f32 %v1007, %v1012
        %v1014 = vmul.f32 %v1013, 1.442695
        %v1015 = vpow.pop %v1014
        %v1016 = vsel %vm438, %v1015, 0.0
        %1017 = vadd.xlane.f32.xlu0 %v1016
        %v1018 = vpop.xlane.xlu0 %1017
        %1019 = vrot.lane.b32.xlu0 %v437, 72
        %v1020 = vpop.permute.xlu0 %1019
        %v1023 = vsel %vm438, %v1015, 0
        %1025 = vmatprep.subr.mxu0 0.0
        %1026 = vmatpush1.msra.mxu0 %v1020
        %1027 = vmatprep.subr.mxu0 0.0
        %1028 = vmatpush1.msra.mxu0 0.0
        %1029 = vmatprep.subr.mxu0 0.0
        %1030 = vmatpush1.msra.mxu0 0.0
        %1031 = vmatprep.subr.mxu0 0.0
        %1032 = vmatpush1.msra.mxu0 0.0
        %1033 = vmatprep.subr.mxu0 0.0
        %1034 = vmatpush1.msra.mxu0 0.0
        %1035 = vmatprep.subr.mxu0 0.0
        %1036 = vmatpush1.msra.mxu0 0.0
        %1037 = vmatprep.subr.mxu0 0.0
        %1038 = vmatpush1.msra.mxu0 0.0
        %1039 = vmatprep.subr.mxu0 0.0
        %1040 = vmatpush1.msra.mxu0 0.0
        %1041 = vmatprep.subr.mxu0 0.0
        %1042 = vmatpush1.msra.mxu0 0.0
        %1043 = vmatprep.subr.mxu0 0.0
        %1044 = vmatpush1.msra.mxu0 0.0
        %1045 = vmatprep.subr.mxu0 0.0
        %1046 = vmatpush1.msra.mxu0 0.0
        %1047 = vmatprep.subr.mxu0 0.0
        %1048 = vmatpush1.msra.mxu0 0.0
        %1049 = vmatprep.subr.mxu0 0.0
        %1050 = vmatpush1.msra.mxu0 0.0
        %1051 = vmatprep.subr.mxu0 0.0
        %1052 = vmatpush1.msra.mxu0 0.0
        %1053 = vmatprep.subr.mxu0 0.0
        %1054 = vmatpush1.msra.mxu0 0.0
        %1055 = vmatprep.subr.mxu0 0.0
        %1056 = vmatpush1.msra.mxu0 0.0
        %1057 = vmatprep.subr.mxu0 0.0
        %1058 = vmatpush1.msra.mxu0 0.0
        %1059 = vmatprep.subr.mxu0 0.0
        %1060 = vmatpush1.msra.mxu0 0.0
        %1061 = vmatprep.subr.mxu0 0.0
        %1062 = vmatpush1.msra.mxu0 0.0
        %1063 = vmatprep.subr.mxu0 0.0
        %1064 = vmatpush1.msra.mxu0 0.0
        %1065 = vmatprep.subr.mxu0 0.0
        %1066 = vmatpush1.msra.mxu0 0.0
        %1067 = vmatprep.subr.mxu0 0.0
        %1068 = vmatpush1.msra.mxu0 0.0
        %1069 = vmatprep.subr.mxu0 0.0
        %1070 = vmatpush1.msra.mxu0 0.0
        %1071 = vmatprep.subr.mxu0 0.0
        %1072 = vmatpush1.msra.mxu0 0.0
        %1073 = vmatprep.subr.mxu0 0.0
        %1074 = vmatpush1.msra.mxu0 0.0
        %1075 = vmatprep.subr.mxu0 0.0
        %1076 = vmatpush1.msra.mxu0 0.0
        %1077 = vmatprep.subr.mxu0 0.0
        %1078 = vmatpush1.msra.mxu0 0.0
        %1079 = vmatprep.subr.mxu0 0.0
        %1080 = vmatpush1.msra.mxu0 0.0
        %1081 = vmatprep.subr.mxu0 0.0
        %1082 = vmatpush1.msra.mxu0 0.0
        %1083 = vmatprep.subr.mxu0 0.0
        %1084 = vmatpush1.msra.mxu0 0.0
        %1085 = vmatprep.subr.mxu0 0.0
        %1086 = vmatpush1.msra.mxu0 0.0
        %1087 = vmatprep.subr.mxu0 0.0
        %1088 = vmatpush1.msra.mxu0 0.0
        %1089 = vmatprep.mubr.f32.mxu0 0.0
        %1090 = vmatmul.mubr.f32.gmra.mrb[0].mxu0 %v1023
        %v1091 = vpop.f32.mrb[0].mxu0
        %v1092 = vadd.f32 0.0, %v1091
        %v1093 = vpop.f32.mrb[0].mxu0
        %1094 = vdwg.mxu0
        %v1095 = vrcp.pop %v1018
        %v1096 = vmul.f32 %v1092, %v1095
        %1098 = vrot.lane.b32.xlu0 %v766, 8
        %v1099 = vpop.permute.xlu0 %1098
        %1102 = vrot.lane.b32.xlu0 %v931, 16
        %v1103 = vpop.permute.xlu0 %1102
        %1106 = vrot.lane.b32.xlu0 %v1096, 24
        %v1107 = vpop.permute.xlu0 %1106
        %v1109 = vsel %vm438, %v601, %v1099
        %vm1110 = vcmask 130048
        %v1111 = vsel %vm1110, %v1109, %v1103
        %vm1112 = vcmask 195584
        %v1113 = vsel %vm1112, %v1111, %v1107
        %v1114 = vld [vmem:[#allocation9] sm:$0xff]
        %v1115 = vld [vmem:[#allocation9 + $0x8] sm:$0xff]
        %v1116 = vld [vmem:[#allocation9 + $0x10] sm:$0xff]
        %v1117 = vld [vmem:[#allocation9 + $0x18] sm:$0xff]
        %v1119 = vsel %vm363, %v1113, 0
        %1121 = vmatprep.subr.mxu0 0.0
        %1122 = vmatpush1.msra.mxu0 %v1114
        %1123 = vmatprep.subr.mxu0 0.0
        %1124 = vmatpush1.msra.mxu0 %v1115
        %1125 = vmatprep.subr.mxu0 0.0
        %1126 = vmatpush1.msra.mxu0 %v1116
        %1127 = vmatprep.subr.mxu0 0.0
        %1128 = vmatpush1.msra.mxu0 %v1117
        %1129 = vmatprep.subr.mxu0 0.0
        %1130 = vmatpush1.msra.mxu0 0.0
        %1131 = vmatprep.subr.mxu0 0.0
        %1132 = vmatpush1.msra.mxu0 0.0
        %1133 = vmatprep.subr.mxu0 0.0
        %1134 = vmatpush1.msra.mxu0 0.0
        %1135 = vmatprep.subr.mxu0 0.0
        %1136 = vmatpush1.msra.mxu0 0.0
        %1137 = vmatprep.subr.mxu0 0.0
        %1138 = vmatpush1.msra.mxu0 0.0
        %1139 = vmatprep.subr.mxu0 0.0
        %1140 = vmatpush1.msra.mxu0 0.0
        %1141 = vmatprep.subr.mxu0 0.0
        %1142 = vmatpush1.msra.mxu0 0.0
        %1143 = vmatprep.subr.mxu0 0.0
        %1144 = vmatpush1.msra.mxu0 0.0
        %1145 = vmatprep.subr.mxu0 0.0
        %1146 = vmatpush1.msra.mxu0 0.0
        %1147 = vmatprep.subr.mxu0 0.0
        %1148 = vmatpush1.msra.mxu0 0.0
        %1149 = vmatprep.subr.mxu0 0.0
        %1150 = vmatpush1.msra.mxu0 0.0
        %1151 = vmatprep.subr.mxu0 0.0
        %1152 = vmatpush1.msra.mxu0 0.0
        %1153 = vmatprep.subr.mxu0 0.0
        %1154 = vmatpush1.msra.mxu0 0.0
        %1155 = vmatprep.subr.mxu0 0.0
        %1156 = vmatpush1.msra.mxu0 0.0
        %1157 = vmatprep.subr.mxu0 0.0
        %1158 = vmatpush1.msra.mxu0 0.0
        %1159 = vmatprep.subr.mxu0 0.0
        %1160 = vmatpush1.msra.mxu0 0.0
        %1161 = vmatprep.subr.mxu0 0.0
        %1162 = vmatpush1.msra.mxu0 0.0
        %1163 = vmatprep.subr.mxu0 0.0
        %1164 = vmatpush1.msra.mxu0 0.0
        %1165 = vmatprep.subr.mxu0 0.0
        %1166 = vmatpush1.msra.mxu0 0.0
        %1167 = vmatprep.subr.mxu0 0.0
        %1168 = vmatpush1.msra.mxu0 0.0
        %1169 = vmatprep.subr.mxu0 0.0
        %1170 = vmatpush1.msra.mxu0 0.0
        %1171 = vmatprep.subr.mxu0 0.0
        %1172 = vmatpush1.msra.mxu0 0.0
        %1173 = vmatprep.subr.mxu0 0.0
        %1174 = vmatpush1.msra.mxu0 0.0
        %1175 = vmatprep.subr.mxu0 0.0
        %1176 = vmatpush1.msra.mxu0 0.0
        %1177 = vmatprep.subr.mxu0 0.0
        %1178 = vmatpush1.msra.mxu0 0.0
        %1179 = vmatprep.subr.mxu0 0.0
        %1180 = vmatpush1.msra.mxu0 0.0
        %1181 = vmatprep.subr.mxu0 0.0
        %1182 = vmatpush1.msra.mxu0 0.0
        %1183 = vmatprep.subr.mxu0 0.0
        %1184 = vmatpush1.msra.mxu0 0.0
        %1185 = vmatprep.mubr.f32.mxu0 0.0
        %1186 = vmatmul.mubr.f32.gmra.mrb[0].mxu0 %v1119
        %v1187 = vpop.f32.mrb[0].mxu0
        %v1188 = vadd.f32 0.0, %v1187
        %v1189 = vpop.f32.mrb[0].mxu0
        %1190 = vdwg.mxu0
        %1191 = vst.msk [vmem:[%s270] sm:$0xff] %vm363, %v1188
        %s1192 = sand.u32 %s134, 1
        %s1193 = scalar_lea.sflag [#allocation5], %s1192
        %s1194 = sand.u32 %s134, 1
        %s1195 = smul.addr %s1194, 8
        %s1196 = scalar_lea.vmem [#allocation11], %s1195
        // Predicated region
        $region57: #{tpu_custom_call.1} parent=35 // pred_check
          %p1197 = pneg %p144
        $region58: #{tpu_custom_call.1} parent=35 // pred_check_branch
          %1199 = sbr.rel (%p1197) target = $region60
        $region59: #{tpu_custom_call.1} parent=35 // pred_region
          %s1201 = ssub.s32 128, 128
          %1202 = vsyncadd %s1193, %s1201
          %s1203 = sadd.s32 %s28, %s27
          %s1204 = smul.addr %s1203, 128
          %s1205 = scalar_lea.hbm %s4, %s1204
          %s1207 = sshll.u32 %s1196, 4
          %s1208 = int_to_ptr.vmem [resolvable:$true] %s1207
          %1210 = dma.vmem_to_hbm [thread:$0]  %s1208, 128, %s1205, %s1193
        $region60: #{tpu_custom_call.1} parent=35 // pred_fallthru
          _
      $region36: #{tpu_custom_call.1} parent=5 // pred_fallthru
        _
      %p1211 = scmp.le.s32.totalorder 2, %s18
      // Predicated region
      $region61: #{tpu_custom_call.1} parent=5 // pred_check
        %p1212 = pneg %p1211
      $region62: #{tpu_custom_call.1} parent=5 // pred_check_branch
        %1214 = sbr.rel (%p1212) target = $region64
      $region63: #{tpu_custom_call.1} parent=5 // pred_region
        %s1215 = ssub.s32 %s18, 2
        // Predicated region
        $region65: #{tpu_custom_call.1} parent=63 // pred_check
          %p1216 = pneg %p150
        $region66: #{tpu_custom_call.1} parent=63 // pred_check_branch
          %1218 = sbr.rel (%p1216) target = $region68
        $region67: #{tpu_custom_call.1} parent=63 // pred_region
          %s1219 = sand.u32 %s135, 1
          %s1220 = scalar_lea.sflag [#allocation5], %s1219
          %s1221 = sand.u32 %s135, 1
          %s1222 = smul.addr %s1221, 8
          %s1223 = scalar_lea.vmem [#allocation11], %s1222
          %1224 = dma.done %s1220, 128
        $region68: #{tpu_custom_call.1} parent=63 // pred_fallthru
          _
      $region64: #{tpu_custom_call.1} parent=5 // pred_fallthru
        _
    $region6: #{tpu_custom_call.1} parent=1 // loop_footer
      %s22 = sadd.s32 1, %s18
    $region7: #{tpu_custom_call.1} parent=1 // loop_footer_branch
      %17 = sbr.rel target = $region3
    $region8: #{tpu_custom_call.1} parent=1 // loop_exit
      _
    %1225 = vsyncpa [#allocation4], 1
    %s1226 = scalar_lea.sflag [#allocation4], 1
    %1227 = vsyncpa %s1226, 1
    %1228 = vsyncpa [#allocation7], 1
    %1229 = vsyncpa [#allocation10], 1
    %1230 = vsyncpa [#allocation5], 1
    %s1231 = scalar_lea.sflag [#allocation5], 1
    %1232 = vsyncpa %s1231, 1

</llo_original>
